<compile_context>
chip_gen: v7x
topology: tpu7x:2x2x1
jax: 0.10.0
libtpu: 0.0.40
codegen_flags: <defaults>
</compile_context>

<pallas_src>
import functools

import jax
import jax.numpy as jnp
from jax import lax
from jax.experimental import pallas as pl
from jax.experimental.pallas import tpu as pltpu

# ---- Config stand-ins (Config.num_classes / Config.expert_num not given) ----
NUM_CLASSES = 10      # FMNIST
WORKER_NUM = 3
FEA_DIM = 512
LINEAR_DIM = 64


def _round_up(x, m):
    return (x + m - 1) // m * m


# -----------------------------------------------------------------------------
# Pallas kernel: linear_1 + ReLU + fused worker fea_to_NT layers (+ group softmax)
# -----------------------------------------------------------------------------
def _nt_kernel(feats_ref, w1_ref, b1_ref, w2_ref, b2_ref, g_ref, gt_ref,
               out_ref, *, n_groups, num_class):
    # feats_ref: [TB, FEA_DIM]
    # w1_ref   : [FEA_DIM, LINEAR_DIM],  b1_ref: [1, LINEAR_DIM]
    # w2_ref   : [LINEAR_DIM, OUT_PAD]   (packed + zero-padded, lane-dense, OUT_PAD % 128 == 0)
    # b2_ref   : [1, OUT_PAD]
    # g_ref    : [OUT_PAD, n_groups]     (0/1 group-indicator; pad rows all-zero)
    # gt_ref   : [n_groups, OUT_PAD]     (transpose; pad columns mapped to group 0)
    # out_ref  : [TB, OUT_PAD]
    h = jnp.dot(feats_ref[...], w1_ref[...], preferred_element_type=jnp.float32)
    h = jnp.maximum(h + b1_ref[...], 0.0)                        # [TB, 64]

    # one fused MXU matmul -> lane-dense logits [TB, OUT_PAD]
    logits = jnp.dot(h, w2_ref[...],
                     preferred_element_type=jnp.float32) + b2_ref[...]

    # per-group max (kept so softmax matches F.softmax exactly); short static unroll,
    # max only — everything else stays vectorized on the dense layout.
    parts = []
    for g in range(n_groups):
        blk = logits[:, g * num_class:(g + 1) * num_class]       # [TB, C]
        parts.append(jnp.max(blk, axis=-1, keepdims=True))       # [TB, 1]
    m_g = jnp.concatenate(parts, axis=-1)                        # [TB, n_groups]
    m_b = jnp.dot(m_g, gt_ref[...],
                  preferred_element_type=jnp.float32)            # broadcast -> [TB, OUT_PAD]

    e = jnp.exp(logits - m_b)                                    # dense EUP exp
    s_g = jnp.dot(e, g_ref[...],
                  preferred_element_type=jnp.float32)            # per-group sums [TB, n_groups]
    denom = jnp.dot(s_g, gt_ref[...],
                    preferred_element_type=jnp.float32)          # broadcast -> [TB, OUT_PAD]
    out_ref[...] = e * pl.reciprocal(denom, approx=False)


def nt_layers_forward(feats, w1, b1, w2p, b2p, *, block_b=256):
    """feats: [B, FEA_DIM] -> noise matrices [B, WORKER_NUM, C, C] (softmax over last axis)."""
    B = feats.shape[0]
    C = NUM_CLASSES
    n_groups = WORKER_NUM * C
    out_dim = n_groups * C                                       # 300
    out_pad = _round_up(out_dim, 128)                            # 384 (lane-full stores)

    # zero-pad packed worker weights/bias along the output axis
    if w2p.shape[1] != out_pad:
        w2p = jnp.pad(w2p, ((0, 0), (0, out_pad - out_dim)))
        b2p = jnp.pad(b2p, ((0, 0), (0, out_pad - out_dim)))

    # 0/1 segment matrices for per-group sum / broadcast on the MXU
    eye = jnp.eye(n_groups, dtype=jnp.float32)
    gmat = jnp.repeat(eye, C, axis=0)                            # [300, 30]
    gmat = jnp.concatenate(
        [gmat, jnp.zeros((out_pad - out_dim, n_groups), jnp.float32)], axis=0)  # [384, 30]
    gmat_t = jnp.repeat(eye, C, axis=1)                          # [30, 300]
    pad_cols = jnp.zeros((n_groups, out_pad - out_dim), jnp.float32).at[0, :].set(1.0)
    gmat_t = jnp.concatenate([gmat_t, pad_cols], axis=1)         # [30, 384], pad cols -> group 0

    # batch tiling (blocks must be multiples of 8 on the sublane axis)
    b_pad8 = _round_up(B, 8)
    tb = b_pad8 if b_pad8 <= block_b else block_b
    b_pad = _round_up(B, tb)
    if b_pad != B:
        feats = jnp.pad(feats, ((0, b_pad - B), (0, 0)))

    kernel = functools.partial(_nt_kernel, n_groups=n_groups, num_class=C)

    out = pl.pallas_call(
        kernel,
        out_shape=jax.ShapeDtypeStruct((b_pad, out_pad), jnp.float32),
        grid_spec=pltpu.PrefetchScalarGridSpec(
            num_scalar_prefetch=0,
            grid=(b_pad // tb,),
            in_specs=[
                pl.BlockSpec((tb, FEA_DIM), lambda i: (i, 0)),          # feats: blocked over B
                pl.BlockSpec((FEA_DIM, LINEAR_DIM), lambda i: (0, 0)),  # weights stay resident
                pl.BlockSpec((1, LINEAR_DIM), lambda i: (0, 0)),
                pl.BlockSpec((LINEAR_DIM, out_pad), lambda i: (0, 0)),
                pl.BlockSpec((1, out_pad), lambda i: (0, 0)),
                pl.BlockSpec((out_pad, n_groups), lambda i: (0, 0)),
                pl.BlockSpec((n_groups, out_pad), lambda i: (0, 0)),
            ],
            out_specs=pl.BlockSpec((tb, out_pad), lambda i: (i, 0)),    # lane-full output
        ),
        compiler_params=pltpu.CompilerParams(
            dimension_semantics=("parallel",)),
    )(feats, w1, b1, w2p, b2p, gmat, gmat_t)

    out = out[:B, :out_dim]
    # free row-major reshape: column index = r*C*C + i*C + j
    return out.reshape(B, WORKER_NUM, C, C)


# -----------------------------------------------------------------------------
# Backbone stand-in (plain JAX glue)
# -----------------------------------------------------------------------------
# TODO(synk): ResNet18_F's source is not provided in the reference module; use a
# deterministic small conv + global-pool + linear stand-in that produces the
# [B, FEA_DIM] feature vector the rest of the module expects.
def standin_backbone(x, conv_w, proj_w, proj_b):
    y = lax.conv_general_dilated(
        x, conv_w, window_strides=(2, 2), padding="SAME",
        dimension_numbers=("NCHW", "OIHW", "NCHW"))
    y = jnp.maximum(y, 0.0)
    y = jnp.mean(y, axis=(2, 3))                     # [B, conv_out]
    return jnp.maximum(y @ proj_w + proj_b, 0.0)     # [B, FEA_DIM]


# -----------------------------------------------------------------------------
# Full module forward
# -----------------------------------------------------------------------------
def module_forward(x, params, worker_id=-1):
    feats = standin_backbone(x, params["conv_w"], params["proj_w"], params["proj_b"])
    all_nt = nt_layers_forward(feats, params["w1"], params["b1"],
                               params["w2p"], params["b2p"])    # [B, W, C, C]
    if worker_id < 0:
        return all_nt
    return all_nt[:, worker_id, :, :]


# -----------------------------------------------------------------------------
# Pure-JAX reference for the Pallas-covered part (linear_1 + workers + softmax)
# -----------------------------------------------------------------------------
def reference_nt(feats, W1, B1, W2_all, B2_all):
    B = feats.shape[0]
    h = jnp.maximum(feats @ W1.T + B1, 0.0)                              # [B, 64]
    logits = jnp.einsum("bd,wkd->bwk", h, W2_all) + B2_all[None]         # [B, W, C*C]
    logits = logits.reshape(B, WORKER_NUM, NUM_CLASSES, NUM_CLASSES)
    return jax.nn.softmax(logits, axis=-1)


if __name__ == "__main__":
    key = jax.random.PRNGKey(0)
    ks = jax.random.split(key, 8)
    B = 8

    # input image batch (NCHW, FMNIST-sized)
    x = jax.random.normal(ks[0], (B, 1, 28, 28), jnp.float32)

    # deterministic parameters
    conv_w = jax.random.normal(ks[1], (8, 1, 3, 3), jnp.float32) * 0.1
    proj_w = jax.random.normal(ks[2], (8, FEA_DIM), jnp.float32) * 0.1
    proj_b = jnp.zeros((FEA_DIM,), jnp.float32)

    # linear_1: PyTorch weight [LINEAR_DIM, FEA_DIM], bias [LINEAR_DIM]
    W1 = jax.random.normal(ks[3], (LINEAR_DIM, FEA_DIM), jnp.float32) * (FEA_DIM ** -0.5)
    B1 = jax.random.normal(ks[4], (LINEAR_DIM,), jnp.float32) * 0.01
    # worker r's to_NT: weight [C*C, LINEAR_DIM], bias [C*C]
    W2_all = jax.random.normal(
        ks[5], (WORKER_NUM, NUM_CLASSES * NUM_CLASSES, LINEAR_DIM),
        jnp.float32) * (LINEAR_DIM ** -0.5)
    B2_all = jax.random.normal(
        ks[6], (WORKER_NUM, NUM_CLASSES * NUM_CLASSES), jnp.float32) * 0.01

    # kernel-side parameter layout (glue):
    #   w1  [FEA_DIM, LINEAR_DIM], b1 [1, LINEAR_DIM]
    #   w2p [LINEAR_DIM, W*C*C]    (column r*C*C + i*C + j == worker r, NT row i, class j)
    #   b2p [1, W*C*C]
    w1 = W1.T
    b1 = B1.reshape(1, LINEAR_DIM)
    w2p = W2_all.reshape(WORKER_NUM * NUM_CLASSES * NUM_CLASSES, LINEAR_DIM).T
    b2p = B2_all.reshape(1, WORKER_NUM * NUM_CLASSES * NUM_CLASSES)

    params = dict(conv_w=conv_w, proj_w=proj_w, proj_b=proj_b,
                  w1=w1, b1=b1, w2p=w2p, b2p=b2p)

    out = module_forward(x, params, worker_id=-1)
    out = jax.block_until_ready(out)

    # correctness check of the Pallas-covered portion
    feats = standin_backbone(x, conv_w, proj_w, proj_b)
    ref = reference_nt(feats, W1, B1, W2_all, B2_all)

    assert out.shape == (B, WORKER_NUM, NUM_CLASSES, NUM_CLASSES), out.shape
    assert out.dtype == jnp.float32
    max_err = float(jnp.max(jnp.abs(out - ref)))
    if max_err < 1e-4:
        print("KERNEL_OK")
    else:
        print(f"MISMATCH max_err={max_err}")
</pallas_src>

<mosaic_0001>
module attributes {stable_mosaic.version = 11 : i64} {
  func.func @_nt_kernel(%arg0: i32, %arg1: memref<8x512xf32, #tpu.memory_space<vmem>>, %arg2: memref<512x64xf32, #tpu.memory_space<vmem>>, %arg3: memref<1x64xf32, #tpu.memory_space<vmem>>, %arg4: memref<64x384xf32, #tpu.memory_space<vmem>>, %arg5: memref<1x384xf32, #tpu.memory_space<vmem>>, %arg6: memref<384x30xf32, #tpu.memory_space<vmem>>, %arg7: memref<30x384xf32, #tpu.memory_space<vmem>>, %arg8: memref<8x384xf32, #tpu.memory_space<vmem>>) attributes {dimension_semantics = [#tpu.dimension_semantics<parallel>], iteration_bounds = array<i64: 1>, scalar_prefetch = 0 : i64, scratch_operands = 0 : i64, tpu.core_type = #tpu.core_type<tc>, window_params = [{transform_indices = @transform_0, window_bounds = array<i64: 8, 512>}, {pipeline_mode = #tpu.pipeline_mode<synchronous>, transform_indices = @transform_1, window_bounds = array<i64: 512, 64>}, {pipeline_mode = #tpu.pipeline_mode<synchronous>, transform_indices = @transform_2, window_bounds = array<i64: 1, 64>}, {pipeline_mode = #tpu.pipeline_mode<synchronous>, transform_indices = @transform_3, window_bounds = array<i64: 64, 384>}, {pipeline_mode = #tpu.pipeline_mode<synchronous>, transform_indices = @transform_4, window_bounds = array<i64: 1, 384>}, {pipeline_mode = #tpu.pipeline_mode<synchronous>, transform_indices = @transform_5, window_bounds = array<i64: 384, 30>}, {pipeline_mode = #tpu.pipeline_mode<synchronous>, transform_indices = @transform_6, window_bounds = array<i64: 30, 384>}, {transform_indices = @transform_7, window_bounds = array<i64: 8, 384>}]} {
    %c0 = arith.constant 0 : index
    %c0_0 = arith.constant 0 : index
    %0 = vector.load %arg1[%c0, %c0_0] : memref<8x512xf32, #tpu.memory_space<vmem>>, vector<8x512xf32>
    %c0_1 = arith.constant 0 : index
    %c0_2 = arith.constant 0 : index
    %1 = vector.load %arg2[%c0_1, %c0_2] : memref<512x64xf32, #tpu.memory_space<vmem>>, vector<512x64xf32>
    %cst = arith.constant dense<0.000000e+00> : vector<8x64xf32>
    %2 = tpu.matmul %0, %1, %cst {dimension_numbers = #tpu.dot_dimension_numbers<[1], [0], [0], [1], [0, 0, 1, 1], [], []>} : vector<8x512xf32>, vector<512x64xf32>, vector<8x64xf32> -> vector<8x64xf32>
    %c0_3 = arith.constant 0 : index
    %c0_4 = arith.constant 0 : index
    %3 = vector.load %arg3[%c0_3, %c0_4] : memref<1x64xf32, #tpu.memory_space<vmem>>, vector<1x64xf32>
    %4 = vector.broadcast %3 : vector<1x64xf32> to vector<8x64xf32>
    %5 = arith.addf %2, %4 : vector<8x64xf32>
    %cst_5 = arith.constant 0.000000e+00 : f32
    %6 = vector.broadcast %cst_5 : f32 to vector<8x64xf32>
    %7 = arith.maximumf %5, %6 : vector<8x64xf32>
    %c0_6 = arith.constant 0 : index
    %c0_7 = arith.constant 0 : index
    %8 = vector.load %arg4[%c0_6, %c0_7] : memref<64x384xf32, #tpu.memory_space<vmem>>, vector<64x384xf32>
    %cst_8 = arith.constant dense<0.000000e+00> : vector<8x384xf32>
    %9 = tpu.matmul %7, %8, %cst_8 {dimension_numbers = #tpu.dot_dimension_numbers<[1], [0], [0], [1], [0, 0, 1, 1], [], []>} : vector<8x64xf32>, vector<64x384xf32>, vector<8x384xf32> -> vector<8x384xf32>
    %c0_9 = arith.constant 0 : index
    %c0_10 = arith.constant 0 : index
    %10 = vector.load %arg5[%c0_9, %c0_10] : memref<1x384xf32, #tpu.memory_space<vmem>>, vector<1x384xf32>
    %11 = vector.broadcast %10 : vector<1x384xf32> to vector<8x384xf32>
    %12 = arith.addf %9, %11 : vector<8x384xf32>
    %13 = vector.extract_strided_slice %12 {offsets = [0, 0], sizes = [8, 10], strides = [1, 1]} : vector<8x384xf32> to vector<8x10xf32>
    %cst_11 = arith.constant dense<0xFF800000> : vector<8xf32>
    %14 = vector.multi_reduction <maximumf>, %13, %cst_11 [1] : vector<8x10xf32> to vector<8xf32>
    %15 = vector.shape_cast %14 : vector<8xf32> to vector<8x1xf32>
    %16 = vector.extract_strided_slice %12 {offsets = [0, 10], sizes = [8, 10], strides = [1, 1]} : vector<8x384xf32> to vector<8x10xf32>
    %cst_12 = arith.constant dense<0xFF800000> : vector<8xf32>
    %17 = vector.multi_reduction <maximumf>, %16, %cst_12 [1] : vector<8x10xf32> to vector<8xf32>
    %18 = vector.shape_cast %17 : vector<8xf32> to vector<8x1xf32>
    %19 = vector.extract_strided_slice %12 {offsets = [0, 20], sizes = [8, 10], strides = [1, 1]} : vector<8x384xf32> to vector<8x10xf32>
    %cst_13 = arith.constant dense<0xFF800000> : vector<8xf32>
    %20 = vector.multi_reduction <maximumf>, %19, %cst_13 [1] : vector<8x10xf32> to vector<8xf32>
    %21 = vector.shape_cast %20 : vector<8xf32> to vector<8x1xf32>
    %22 = vector.extract_strided_slice %12 {offsets = [0, 30], sizes = [8, 10], strides = [1, 1]} : vector<8x384xf32> to vector<8x10xf32>
    %cst_14 = arith.constant dense<0xFF800000> : vector<8xf32>
    %23 = vector.multi_reduction <maximumf>, %22, %cst_14 [1] : vector<8x10xf32> to vector<8xf32>
    %24 = vector.shape_cast %23 : vector<8xf32> to vector<8x1xf32>
    %25 = vector.extract_strided_slice %12 {offsets = [0, 40], sizes = [8, 10], strides = [1, 1]} : vector<8x384xf32> to vector<8x10xf32>
    %cst_15 = arith.constant dense<0xFF800000> : vector<8xf32>
    %26 = vector.multi_reduction <maximumf>, %25, %cst_15 [1] : vector<8x10xf32> to vector<8xf32>
    %27 = vector.shape_cast %26 : vector<8xf32> to vector<8x1xf32>
    %28 = vector.extract_strided_slice %12 {offsets = [0, 50], sizes = [8, 10], strides = [1, 1]} : vector<8x384xf32> to vector<8x10xf32>
    %cst_16 = arith.constant dense<0xFF800000> : vector<8xf32>
    %29 = vector.multi_reduction <maximumf>, %28, %cst_16 [1] : vector<8x10xf32> to vector<8xf32>
    %30 = vector.shape_cast %29 : vector<8xf32> to vector<8x1xf32>
    %31 = vector.extract_strided_slice %12 {offsets = [0, 60], sizes = [8, 10], strides = [1, 1]} : vector<8x384xf32> to vector<8x10xf32>
    %cst_17 = arith.constant dense<0xFF800000> : vector<8xf32>
    %32 = vector.multi_reduction <maximumf>, %31, %cst_17 [1] : vector<8x10xf32> to vector<8xf32>
    %33 = vector.shape_cast %32 : vector<8xf32> to vector<8x1xf32>
    %34 = vector.extract_strided_slice %12 {offsets = [0, 70], sizes = [8, 10], strides = [1, 1]} : vector<8x384xf32> to vector<8x10xf32>
    %cst_18 = arith.constant dense<0xFF800000> : vector<8xf32>
    %35 = vector.multi_reduction <maximumf>, %34, %cst_18 [1] : vector<8x10xf32> to vector<8xf32>
    %36 = vector.shape_cast %35 : vector<8xf32> to vector<8x1xf32>
    %37 = vector.extract_strided_slice %12 {offsets = [0, 80], sizes = [8, 10], strides = [1, 1]} : vector<8x384xf32> to vector<8x10xf32>
    %cst_19 = arith.constant dense<0xFF800000> : vector<8xf32>
    %38 = vector.multi_reduction <maximumf>, %37, %cst_19 [1] : vector<8x10xf32> to vector<8xf32>
    %39 = vector.shape_cast %38 : vector<8xf32> to vector<8x1xf32>
    %40 = vector.extract_strided_slice %12 {offsets = [0, 90], sizes = [8, 10], strides = [1, 1]} : vector<8x384xf32> to vector<8x10xf32>
    %cst_20 = arith.constant dense<0xFF800000> : vector<8xf32>
    %41 = vector.multi_reduction <maximumf>, %40, %cst_20 [1] : vector<8x10xf32> to vector<8xf32>
    %42 = vector.shape_cast %41 : vector<8xf32> to vector<8x1xf32>
    %43 = vector.extract_strided_slice %12 {offsets = [0, 100], sizes = [8, 10], strides = [1, 1]} : vector<8x384xf32> to vector<8x10xf32>
    %cst_21 = arith.constant dense<0xFF800000> : vector<8xf32>
    %44 = vector.multi_reduction <maximumf>, %43, %cst_21 [1] : vector<8x10xf32> to vector<8xf32>
    %45 = vector.shape_cast %44 : vector<8xf32> to vector<8x1xf32>
    %46 = vector.extract_strided_slice %12 {offsets = [0, 110], sizes = [8, 10], strides = [1, 1]} : vector<8x384xf32> to vector<8x10xf32>
    %cst_22 = arith.constant dense<0xFF800000> : vector<8xf32>
    %47 = vector.multi_reduction <maximumf>, %46, %cst_22 [1] : vector<8x10xf32> to vector<8xf32>
    %48 = vector.shape_cast %47 : vector<8xf32> to vector<8x1xf32>
    %49 = vector.extract_strided_slice %12 {offsets = [0, 120], sizes = [8, 10], strides = [1, 1]} : vector<8x384xf32> to vector<8x10xf32>
    %cst_23 = arith.constant dense<0xFF800000> : vector<8xf32>
    %50 = vector.multi_reduction <maximumf>, %49, %cst_23 [1] : vector<8x10xf32> to vector<8xf32>
    %51 = vector.shape_cast %50 : vector<8xf32> to vector<8x1xf32>
    %52 = vector.extract_strided_slice %12 {offsets = [0, 130], sizes = [8, 10], strides = [1, 1]} : vector<8x384xf32> to vector<8x10xf32>
    %cst_24 = arith.constant dense<0xFF800000> : vector<8xf32>
    %53 = vector.multi_reduction <maximumf>, %52, %cst_24 [1] : vector<8x10xf32> to vector<8xf32>
    %54 = vector.shape_cast %53 : vector<8xf32> to vector<8x1xf32>
    %55 = vector.extract_strided_slice %12 {offsets = [0, 140], sizes = [8, 10], strides = [1, 1]} : vector<8x384xf32> to vector<8x10xf32>
    %cst_25 = arith.constant dense<0xFF800000> : vector<8xf32>
    %56 = vector.multi_reduction <maximumf>, %55, %cst_25 [1] : vector<8x10xf32> to vector<8xf32>
    %57 = vector.shape_cast %56 : vector<8xf32> to vector<8x1xf32>
    %58 = vector.extract_strided_slice %12 {offsets = [0, 150], sizes = [8, 10], strides = [1, 1]} : vector<8x384xf32> to vector<8x10xf32>
    %cst_26 = arith.constant dense<0xFF800000> : vector<8xf32>
    %59 = vector.multi_reduction <maximumf>, %58, %cst_26 [1] : vector<8x10xf32> to vector<8xf32>
    %60 = vector.shape_cast %59 : vector<8xf32> to vector<8x1xf32>
    %61 = vector.extract_strided_slice %12 {offsets = [0, 160], sizes = [8, 10], strides = [1, 1]} : vector<8x384xf32> to vector<8x10xf32>
    %cst_27 = arith.constant dense<0xFF800000> : vector<8xf32>
    %62 = vector.multi_reduction <maximumf>, %61, %cst_27 [1] : vector<8x10xf32> to vector<8xf32>
    %63 = vector.shape_cast %62 : vector<8xf32> to vector<8x1xf32>
    %64 = vector.extract_strided_slice %12 {offsets = [0, 170], sizes = [8, 10], strides = [1, 1]} : vector<8x384xf32> to vector<8x10xf32>
    %cst_28 = arith.constant dense<0xFF800000> : vector<8xf32>
    %65 = vector.multi_reduction <maximumf>, %64, %cst_28 [1] : vector<8x10xf32> to vector<8xf32>
    %66 = vector.shape_cast %65 : vector<8xf32> to vector<8x1xf32>
    %67 = vector.extract_strided_slice %12 {offsets = [0, 180], sizes = [8, 10], strides = [1, 1]} : vector<8x384xf32> to vector<8x10xf32>
    %cst_29 = arith.constant dense<0xFF800000> : vector<8xf32>
    %68 = vector.multi_reduction <maximumf>, %67, %cst_29 [1] : vector<8x10xf32> to vector<8xf32>
    %69 = vector.shape_cast %68 : vector<8xf32> to vector<8x1xf32>
    %70 = vector.extract_strided_slice %12 {offsets = [0, 190], sizes = [8, 10], strides = [1, 1]} : vector<8x384xf32> to vector<8x10xf32>
    %cst_30 = arith.constant dense<0xFF800000> : vector<8xf32>
    %71 = vector.multi_reduction <maximumf>, %70, %cst_30 [1] : vector<8x10xf32> to vector<8xf32>
    %72 = vector.shape_cast %71 : vector<8xf32> to vector<8x1xf32>
    %73 = vector.extract_strided_slice %12 {offsets = [0, 200], sizes = [8, 10], strides = [1, 1]} : vector<8x384xf32> to vector<8x10xf32>
    %cst_31 = arith.constant dense<0xFF800000> : vector<8xf32>
    %74 = vector.multi_reduction <maximumf>, %73, %cst_31 [1] : vector<8x10xf32> to vector<8xf32>
    %75 = vector.shape_cast %74 : vector<8xf32> to vector<8x1xf32>
    %76 = vector.extract_strided_slice %12 {offsets = [0, 210], sizes = [8, 10], strides = [1, 1]} : vector<8x384xf32> to vector<8x10xf32>
    %cst_32 = arith.constant dense<0xFF800000> : vector<8xf32>
    %77 = vector.multi_reduction <maximumf>, %76, %cst_32 [1] : vector<8x10xf32> to vector<8xf32>
    %78 = vector.shape_cast %77 : vector<8xf32> to vector<8x1xf32>
    %79 = vector.extract_strided_slice %12 {offsets = [0, 220], sizes = [8, 10], strides = [1, 1]} : vector<8x384xf32> to vector<8x10xf32>
    %cst_33 = arith.constant dense<0xFF800000> : vector<8xf32>
    %80 = vector.multi_reduction <maximumf>, %79, %cst_33 [1] : vector<8x10xf32> to vector<8xf32>
    %81 = vector.shape_cast %80 : vector<8xf32> to vector<8x1xf32>
    %82 = vector.extract_strided_slice %12 {offsets = [0, 230], sizes = [8, 10], strides = [1, 1]} : vector<8x384xf32> to vector<8x10xf32>
    %cst_34 = arith.constant dense<0xFF800000> : vector<8xf32>
    %83 = vector.multi_reduction <maximumf>, %82, %cst_34 [1] : vector<8x10xf32> to vector<8xf32>
    %84 = vector.shape_cast %83 : vector<8xf32> to vector<8x1xf32>
    %85 = vector.extract_strided_slice %12 {offsets = [0, 240], sizes = [8, 10], strides = [1, 1]} : vector<8x384xf32> to vector<8x10xf32>
    %cst_35 = arith.constant dense<0xFF800000> : vector<8xf32>
    %86 = vector.multi_reduction <maximumf>, %85, %cst_35 [1] : vector<8x10xf32> to vector<8xf32>
    %87 = vector.shape_cast %86 : vector<8xf32> to vector<8x1xf32>
    %88 = vector.extract_strided_slice %12 {offsets = [0, 250], sizes = [8, 10], strides = [1, 1]} : vector<8x384xf32> to vector<8x10xf32>
    %cst_36 = arith.constant dense<0xFF800000> : vector<8xf32>
    %89 = vector.multi_reduction <maximumf>, %88, %cst_36 [1] : vector<8x10xf32> to vector<8xf32>
    %90 = vector.shape_cast %89 : vector<8xf32> to vector<8x1xf32>
    %91 = vector.extract_strided_slice %12 {offsets = [0, 260], sizes = [8, 10], strides = [1, 1]} : vector<8x384xf32> to vector<8x10xf32>
    %cst_37 = arith.constant dense<0xFF800000> : vector<8xf32>
    %92 = vector.multi_reduction <maximumf>, %91, %cst_37 [1] : vector<8x10xf32> to vector<8xf32>
    %93 = vector.shape_cast %92 : vector<8xf32> to vector<8x1xf32>
    %94 = vector.extract_strided_slice %12 {offsets = [0, 270], sizes = [8, 10], strides = [1, 1]} : vector<8x384xf32> to vector<8x10xf32>
    %cst_38 = arith.constant dense<0xFF800000> : vector<8xf32>
    %95 = vector.multi_reduction <maximumf>, %94, %cst_38 [1] : vector<8x10xf32> to vector<8xf32>
    %96 = vector.shape_cast %95 : vector<8xf32> to vector<8x1xf32>
    %97 = vector.extract_strided_slice %12 {offsets = [0, 280], sizes = [8, 10], strides = [1, 1]} : vector<8x384xf32> to vector<8x10xf32>
    %cst_39 = arith.constant dense<0xFF800000> : vector<8xf32>
    %98 = vector.multi_reduction <maximumf>, %97, %cst_39 [1] : vector<8x10xf32> to vector<8xf32>
    %99 = vector.shape_cast %98 : vector<8xf32> to vector<8x1xf32>
    %100 = vector.extract_strided_slice %12 {offsets = [0, 290], sizes = [8, 10], strides = [1, 1]} : vector<8x384xf32> to vector<8x10xf32>
    %cst_40 = arith.constant dense<0xFF800000> : vector<8xf32>
    %101 = vector.multi_reduction <maximumf>, %100, %cst_40 [1] : vector<8x10xf32> to vector<8xf32>
    %102 = vector.shape_cast %101 : vector<8xf32> to vector<8x1xf32>
    %103 = tpu.concatenate %15, %18, %21, %24, %27, %30, %33, %36, %39, %42, %45, %48, %51, %54, %57, %60 in 1 : vector<8x1xf32>, vector<8x1xf32>, vector<8x1xf32>, vector<8x1xf32>, vector<8x1xf32>, vector<8x1xf32>, vector<8x1xf32>, vector<8x1xf32>, vector<8x1xf32>, vector<8x1xf32>, vector<8x1xf32>, vector<8x1xf32>, vector<8x1xf32>, vector<8x1xf32>, vector<8x1xf32>, vector<8x1xf32> -> vector<8x16xf32>
    %104 = tpu.concatenate %63, %66, %69, %72, %75, %78, %81, %84, %87, %90, %93, %96, %99, %102 in 1 : vector<8x1xf32>, vector<8x1xf32>, vector<8x1xf32>, vector<8x1xf32>, vector<8x1xf32>, vector<8x1xf32>, vector<8x1xf32>, vector<8x1xf32>, vector<8x1xf32>, vector<8x1xf32>, vector<8x1xf32>, vector<8x1xf32>, vector<8x1xf32>, vector<8x1xf32> -> vector<8x14xf32>
    %105 = tpu.concatenate %103, %104 in 1 : vector<8x16xf32>, vector<8x14xf32> -> vector<8x30xf32>
    %c0_41 = arith.constant 0 : index
    %c0_42 = arith.constant 0 : index
    %106 = vector.load %arg7[%c0_41, %c0_42] : memref<30x384xf32, #tpu.memory_space<vmem>>, vector<30x384xf32>
    %cst_43 = arith.constant dense<0.000000e+00> : vector<8x384xf32>
    %107 = tpu.matmul %105, %106, %cst_43 {dimension_numbers = #tpu.dot_dimension_numbers<[1], [0], [0], [1], [0, 0, 1, 1], [], []>} : vector<8x30xf32>, vector<30x384xf32>, vector<8x384xf32> -> vector<8x384xf32>
    %108 = arith.subf %12, %107 : vector<8x384xf32>
    %109 = math.exp %108 : vector<8x384xf32>
    %c0_44 = arith.constant 0 : index
    %c0_45 = arith.constant 0 : index
    %110 = vector.load %arg6[%c0_44, %c0_45] : memref<384x30xf32, #tpu.memory_space<vmem>>, vector<384x30xf32>
    %cst_46 = arith.constant dense<0.000000e+00> : vector<8x30xf32>
    %111 = tpu.matmul %109, %110, %cst_46 {dimension_numbers = #tpu.dot_dimension_numbers<[1], [0], [0], [1], [0, 0, 1, 1], [], []>} : vector<8x384xf32>, vector<384x30xf32>, vector<8x30xf32> -> vector<8x30xf32>
    %c0_47 = arith.constant 0 : index
    %c0_48 = arith.constant 0 : index
    %112 = vector.load %arg7[%c0_47, %c0_48] : memref<30x384xf32, #tpu.memory_space<vmem>>, vector<30x384xf32>
    %cst_49 = arith.constant dense<0.000000e+00> : vector<8x384xf32>
    %113 = tpu.matmul %111, %112, %cst_49 {dimension_numbers = #tpu.dot_dimension_numbers<[1], [0], [0], [1], [0, 0, 1, 1], [], []>} : vector<8x30xf32>, vector<30x384xf32>, vector<8x384xf32> -> vector<8x384xf32>
    %114 = tpu.reciprocal %113 : vector<8x384xf32> -> vector<8x384xf32>
    %115 = arith.mulf %109, %114 : vector<8x384xf32>
    %c0_50 = arith.constant 0 : index
    %c0_51 = arith.constant 0 : index
    %116 = vector.load %arg8[%c0_50, %c0_51] : memref<8x384xf32, #tpu.memory_space<vmem>>, vector<8x384xf32>
    tpu.vector_store %arg8[%c0_50, %c0_51], %115 {strides = array<i32>} : memref<8x384xf32, #tpu.memory_space<vmem>>, vector<8x384xf32>,
    return
  }
  func.func @transform_0(%arg0: i32) -> (i32, i32) {
    %c0_i32 = arith.constant 0 : i32
    %c0_i32_0 = arith.constant 0 : i32
    return %arg0, %c0_i32 : i32, i32
  }
  func.func @transform_1(%arg0: i32) -> (i32, i32) {
    %c0_i32 = arith.constant 0 : i32
    %c0_i32_0 = arith.constant 0 : i32
    %c0_i32_1 = arith.constant 0 : i32
    return %c0_i32, %c0_i32_0 : i32, i32
  }
  func.func @transform_2(%arg0: i32) -> (i32, i32) {
    %c0_i32 = arith.constant 0 : i32
    %c0_i32_0 = arith.constant 0 : i32
    %c0_i32_1 = arith.constant 0 : i32
    return %c0_i32, %c0_i32_0 : i32, i32
  }
  func.func @transform_3(%arg0: i32) -> (i32, i32) {
    %c0_i32 = arith.constant 0 : i32
    %c0_i32_0 = arith.constant 0 : i32
    %c0_i32_1 = arith.constant 0 : i32
    return %c0_i32, %c0_i32_0 : i32, i32
  }
  func.func @transform_4(%arg0: i32) -> (i32, i32) {
    %c0_i32 = arith.constant 0 : i32
    %c0_i32_0 = arith.constant 0 : i32
    %c0_i32_1 = arith.constant 0 : i32
    return %c0_i32, %c0_i32_0 : i32, i32
  }
  func.func @transform_5(%arg0: i32) -> (i32, i32) {
    %c0_i32 = arith.constant 0 : i32
    %c0_i32_0 = arith.constant 0 : i32
    %c0_i32_1 = arith.constant 0 : i32
    return %c0_i32, %c0_i32_0 : i32, i32
  }
  func.func @transform_6(%arg0: i32) -> (i32, i32) {
    %c0_i32 = arith.constant 0 : i32
    %c0_i32_0 = arith.constant 0 : i32
    %c0_i32_1 = arith.constant 0 : i32
    return %c0_i32, %c0_i32_0 : i32, i32
  }
  func.func @transform_7(%arg0: i32) -> (i32, i32) {
    %c0_i32 = arith.constant 0 : i32
    %c0_i32_0 = arith.constant 0 : i32
    return %arg0, %c0_i32 : i32, i32
  }
}

</mosaic_0001>

<llo_original>
// kernel: tpu_custom_call.1
$region0: #{tpu_custom_call.1}
  #allocation0 [shape = 'u32[]', space=smem, size = 0x4, offset = 0x4, fixed_abs, tag = 'smem constant byte address 0x4 - core index']
  #allocation1 [shape = 'u32[144,128]{1,0:T(1,128)}', space=vmem, size = 0x12000, scoped, tag = 'internal scratch']
  %s0 = inlined_call_operand.vmem [shape: f32[8,512], index: 0, kind: input, shape index: {}]
  %s1 = inlined_call_operand.vmem [shape: f32[512,64], index: 1, kind: input, shape index: {}]
  %s2 = inlined_call_operand.vmem [shape: f32[1,64], index: 2, kind: input, shape index: {}]
  %s3 = inlined_call_operand.vmem [shape: f32[64,384], index: 3, kind: input, shape index: {}]
  %s4 = inlined_call_operand.vmem [shape: f32[1,384], index: 4, kind: input, shape index: {}]
  %s5 = inlined_call_operand.vmem [shape: f32[384,30], index: 5, kind: input, shape index: {}]
  %s6 = inlined_call_operand.vmem [shape: f32[30,384], index: 6, kind: input, shape index: {}]
  %s7 = inlined_call_operand.hbm [shape: f32[8,384], index: 7, kind: output, shape index: {}]
  %s8 = sld [smem:[#allocation0]]
  $region38: #{tpu_custom_call.1} parent=0
    _
  %s10 = ssub.s32 1, %s8
  %s11 = scalar_select 0, %s10, %s8
  $region1: #{tpu_custom_call.1} parent=0
    #allocation2 [shape = 'u8[12288]{0}', space=vmem, size = 0x3000, scoped, tag = 'output window, operand 0, single buffered']
    #allocation3 [shape = 's32[1]{0}', space=sflag, size = 0x4, scoped, tag = 'scoped memory for tpu_custom_call.1']
    %12 = vsyncpa [#allocation3], 0
    // Predicated region
    $region2: #{tpu_custom_call.1} parent=1 // pred_check
      _
    $region3: #{tpu_custom_call.1} parent=1 // pred_check_branch
      %14 = sbr.rel (0) target = $region5
    $region4: #{tpu_custom_call.1} parent=1 // pred_region
      _
    $region5: #{tpu_custom_call.1} parent=1 // pred_fallthru
      _
    // Predicated region
    $region6: #{tpu_custom_call.1} parent=1 // pred_check
      _
    $region7: #{tpu_custom_call.1} parent=1 // pred_check_branch
      %16 = sbr.rel (0) target = $region9
    $region8: #{tpu_custom_call.1} parent=1 // pred_region
      _
    $region9: #{tpu_custom_call.1} parent=1 // pred_fallthru
      _
    // Predicated region
    $region10: #{tpu_custom_call.1} parent=1 // pred_check
      _
    $region11: #{tpu_custom_call.1} parent=1 // pred_check_branch
      %18 = sbr.rel (0) target = $region13
    $region12: #{tpu_custom_call.1} parent=1 // pred_region
      _
    $region13: #{tpu_custom_call.1} parent=1 // pred_fallthru
      _
    // Predicated region
    $region14: #{tpu_custom_call.1} parent=1 // pred_check
      _
    $region15: #{tpu_custom_call.1} parent=1 // pred_check_branch
      %20 = sbr.rel (0) target = $region17
    $region16: #{tpu_custom_call.1} parent=1 // pred_region
      _
    $region17: #{tpu_custom_call.1} parent=1 // pred_fallthru
      _
    // Predicated region
    $region18: #{tpu_custom_call.1} parent=1 // pred_check
      _
    $region19: #{tpu_custom_call.1} parent=1 // pred_check_branch
      %22 = sbr.rel (0) target = $region21
    $region20: #{tpu_custom_call.1} parent=1 // pred_region
      _
    $region21: #{tpu_custom_call.1} parent=1 // pred_fallthru
      _
    // Predicated region
    $region22: #{tpu_custom_call.1} parent=1 // pred_check
      _
    $region23: #{tpu_custom_call.1} parent=1 // pred_check_branch
      %24 = sbr.rel (0) target = $region25
    $region24: #{tpu_custom_call.1} parent=1 // pred_region
      _
    $region25: #{tpu_custom_call.1} parent=1 // pred_fallthru
      _
    // Predicated region
    $region26: #{tpu_custom_call.1} parent=1 // pred_check
      _
    $region27: #{tpu_custom_call.1} parent=1 // pred_check_branch
      %26 = sbr.rel (0) target = $region29
    $region28: #{tpu_custom_call.1} parent=1 // pred_region
      _
    $region29: #{tpu_custom_call.1} parent=1 // pred_fallthru
      _
    %v27 = vld [vmem:[%s0] sm:$0xff]
    %v28 = vld [vmem:[%s0 + $0x8] sm:$0xff]
    %v29 = vld [vmem:[%s0 + $0x10] sm:$0xff]
    %v30 = vld [vmem:[%s0 + $0x18] sm:$0xff]
    %v31 = vld [vmem:[%s1] sm:$0xff]
    %v32 = vld [vmem:[%s1 + $0x8] sm:$0xff]
    %v33 = vld [vmem:[%s1 + $0x10] sm:$0xff]
    %v34 = vld [vmem:[%s1 + $0x18] sm:$0xff]
    %v35 = vld [vmem:[%s1 + $0x20] sm:$0xff]
    %v36 = vld [vmem:[%s1 + $0x28] sm:$0xff]
    %v37 = vld [vmem:[%s1 + $0x30] sm:$0xff]
    %v38 = vld [vmem:[%s1 + $0x38] sm:$0xff]
    %v39 = vld [vmem:[%s1 + $0x40] sm:$0xff]
    %v40 = vld [vmem:[%s1 + $0x48] sm:$0xff]
    %v41 = vld [vmem:[%s1 + $0x50] sm:$0xff]
    %v42 = vld [vmem:[%s1 + $0x58] sm:$0xff]
    %v43 = vld [vmem:[%s1 + $0x60] sm:$0xff]
    %v44 = vld [vmem:[%s1 + $0x68] sm:$0xff]
    %v45 = vld [vmem:[%s1 + $0x70] sm:$0xff]
    %v46 = vld [vmem:[%s1 + $0x78] sm:$0xff]
    %v47 = vld [vmem:[%s1 + $0x80] sm:$0xff]
    %v48 = vld [vmem:[%s1 + $0x88] sm:$0xff]
    %v49 = vld [vmem:[%s1 + $0x90] sm:$0xff]
    %v50 = vld [vmem:[%s1 + $0x98] sm:$0xff]
    %v51 = vld [vmem:[%s1 + $0xa0] sm:$0xff]
    %v52 = vld [vmem:[%s1 + $0xa8] sm:$0xff]
    %v53 = vld [vmem:[%s1 + $0xb0] sm:$0xff]
    %v54 = vld [vmem:[%s1 + $0xb8] sm:$0xff]
    %v55 = vld [vmem:[%s1 + $0xc0] sm:$0xff]
    %v56 = vld [vmem:[%s1 + $0xc8] sm:$0xff]
    %v57 = vld [vmem:[%s1 + $0xd0] sm:$0xff]
    %v58 = vld [vmem:[%s1 + $0xd8] sm:$0xff]
    %v59 = vld [vmem:[%s1 + $0xe0] sm:$0xff]
    %v60 = vld [vmem:[%s1 + $0xe8] sm:$0xff]
    %v61 = vld [vmem:[%s1 + $0xf0] sm:$0xff]
    %v62 = vld [vmem:[%s1 + $0xf8] sm:$0xff]
    %v63 = vld [vmem:[%s1 + $0x100] sm:$0xff]
    %v64 = vld [vmem:[%s1 + $0x108] sm:$0xff]
    %v65 = vld [vmem:[%s1 + $0x110] sm:$0xff]
    %v66 = vld [vmem:[%s1 + $0x118] sm:$0xff]
    %v67 = vld [vmem:[%s1 + $0x120] sm:$0xff]
    %v68 = vld [vmem:[%s1 + $0x128] sm:$0xff]
    %v69 = vld [vmem:[%s1 + $0x130] sm:$0xff]
    %v70 = vld [vmem:[%s1 + $0x138] sm:$0xff]
    %v71 = vld [vmem:[%s1 + $0x140] sm:$0xff]
    %v72 = vld [vmem:[%s1 + $0x148] sm:$0xff]
    %v73 = vld [vmem:[%s1 + $0x150] sm:$0xff]
    %v74 = vld [vmem:[%s1 + $0x158] sm:$0xff]
    %v75 = vld [vmem:[%s1 + $0x160] sm:$0xff]
    %v76 = vld [vmem:[%s1 + $0x168] sm:$0xff]
    %v77 = vld [vmem:[%s1 + $0x170] sm:$0xff]
    %v78 = vld [vmem:[%s1 + $0x178] sm:$0xff]
    %v79 = vld [vmem:[%s1 + $0x180] sm:$0xff]
    %v80 = vld [vmem:[%s1 + $0x188] sm:$0xff]
    %v81 = vld [vmem:[%s1 + $0x190] sm:$0xff]
    %v82 = vld [vmem:[%s1 + $0x198] sm:$0xff]
    %v83 = vld [vmem:[%s1 + $0x1a0] sm:$0xff]
    %v84 = vld [vmem:[%s1 + $0x1a8] sm:$0xff]
    %v85 = vld [vmem:[%s1 + $0x1b0] sm:$0xff]
    %v86 = vld [vmem:[%s1 + $0x1b8] sm:$0xff]
    %v87 = vld [vmem:[%s1 + $0x1c0] sm:$0xff]
    %v88 = vld [vmem:[%s1 + $0x1c8] sm:$0xff]
    %v89 = vld [vmem:[%s1 + $0x1d0] sm:$0xff]
    %v90 = vld [vmem:[%s1 + $0x1d8] sm:$0xff]
    %v91 = vld [vmem:[%s1 + $0x1e0] sm:$0xff]
    %v92 = vld [vmem:[%s1 + $0x1e8] sm:$0xff]
    %v93 = vld [vmem:[%s1 + $0x1f0] sm:$0xff]
    %v94 = vld [vmem:[%s1 + $0x1f8] sm:$0xff]
    %v95 = vld [vmem:[%s2] sm:$0x1]
    %v97 = vlaneseq
    %v98 = vshrl.u32 %v97, 7
    %v99 = vsub.s32 0, %v98
    %v100 = vrot.slane %v95, %v99
    %102 = vmatprep.subr.mxu0 0.0
    %103 = vmatpush1.msra.mxu0 %v31
    %104 = vmatprep.subr.mxu0 0.0
    %105 = vmatpush1.msra.mxu0 %v32
    %106 = vmatprep.subr.mxu0 0.0
    %107 = vmatpush1.msra.mxu0 %v33
    %108 = vmatprep.subr.mxu0 0.0
    %109 = vmatpush1.msra.mxu0 %v34
    %110 = vmatprep.subr.mxu0 0.0
    %111 = vmatpush1.msra.mxu0 %v35
    %112 = vmatprep.subr.mxu0 0.0
    %113 = vmatpush1.msra.mxu0 %v36
    %114 = vmatprep.subr.mxu0 0.0
    %115 = vmatpush1.msra.mxu0 %v37
    %116 = vmatprep.subr.mxu0 0.0
    %117 = vmatpush1.msra.mxu0 %v38
    %118 = vmatprep.subr.mxu0 0.0
    %119 = vmatpush1.msra.mxu0 %v39
    %120 = vmatprep.subr.mxu0 0.0
    %121 = vmatpush1.msra.mxu0 %v40
    %122 = vmatprep.subr.mxu0 0.0
    %123 = vmatpush1.msra.mxu0 %v41
    %124 = vmatprep.subr.mxu0 0.0
    %125 = vmatpush1.msra.mxu0 %v42
    %126 = vmatprep.subr.mxu0 0.0
    %127 = vmatpush1.msra.mxu0 %v43
    %128 = vmatprep.subr.mxu0 0.0
    %129 = vmatpush1.msra.mxu0 %v44
    %130 = vmatprep.subr.mxu0 0.0
    %131 = vmatpush1.msra.mxu0 %v45
    %132 = vmatprep.subr.mxu0 0.0
    %133 = vmatpush1.msra.mxu0 %v46
    %134 = vmatprep.subr.mxu0 0.0
    %135 = vmatpush1.msra.mxu0 %v47
    %136 = vmatprep.subr.mxu0 0.0
    %137 = vmatpush1.msra.mxu0 %v48
    %138 = vmatprep.subr.mxu0 0.0
    %139 = vmatpush1.msra.mxu0 %v49
    %140 = vmatprep.subr.mxu0 0.0
    %141 = vmatpush1.msra.mxu0 %v50
    %142 = vmatprep.subr.mxu0 0.0
    %143 = vmatpush1.msra.mxu0 %v51
    %144 = vmatprep.subr.mxu0 0.0
    %145 = vmatpush1.msra.mxu0 %v52
    %146 = vmatprep.subr.mxu0 0.0
    %147 = vmatpush1.msra.mxu0 %v53
    %148 = vmatprep.subr.mxu0 0.0
    %149 = vmatpush1.msra.mxu0 %v54
    %150 = vmatprep.subr.mxu0 0.0
    %151 = vmatpush1.msra.mxu0 %v55
    %152 = vmatprep.subr.mxu0 0.0
    %153 = vmatpush1.msra.mxu0 %v56
    %154 = vmatprep.subr.mxu0 0.0
    %155 = vmatpush1.msra.mxu0 %v57
    %156 = vmatprep.subr.mxu0 0.0
    %157 = vmatpush1.msra.mxu0 %v58
    %158 = vmatprep.subr.mxu0 0.0
    %159 = vmatpush1.msra.mxu0 %v59
    %160 = vmatprep.subr.mxu0 0.0
    %161 = vmatpush1.msra.mxu0 %v60
    %162 = vmatprep.subr.mxu0 0.0
    %163 = vmatpush1.msra.mxu0 %v61
    %164 = vmatprep.subr.mxu0 0.0
    %165 = vmatpush1.msra.mxu0 %v62
    %166 = vmatprep.mubr.f32.mxu0 %v28
    %167 = vmatmul.mubr.f32.gmra.mrb[0].mxu0 %v27
    %v168 = vpop.f32.mrb[0].mxu0
    %v169 = vadd.f32 %v100, %v168
    %v170 = vpop.f32.mrb[0].mxu0
    %171 = vdwg.mxu0
    %172 = vmatprep.subr.mxu0 0.0
    %173 = vmatpush1.msra.mxu0 %v63
    %174 = vmatprep.subr.mxu0 0.0
    %175 = vmatpush1.msra.mxu0 %v64
    %176 = vmatprep.subr.mxu0 0.0
    %177 = vmatpush1.msra.mxu0 %v65
    %178 = vmatprep.subr.mxu0 0.0
    %179 = vmatpush1.msra.mxu0 %v66
    %180 = vmatprep.subr.mxu0 0.0
    %181 = vmatpush1.msra.mxu0 %v67
    %182 = vmatprep.subr.mxu0 0.0
    %183 = vmatpush1.msra.mxu0 %v68
    %184 = vmatprep.subr.mxu0 0.0
    %185 = vmatpush1.msra.mxu0 %v69
    %186 = vmatprep.subr.mxu0 0.0
    %187 = vmatpush1.msra.mxu0 %v70
    %188 = vmatprep.subr.mxu0 0.0
    %189 = vmatpush1.msra.mxu0 %v71
    %190 = vmatprep.subr.mxu0 0.0
    %191 = vmatpush1.msra.mxu0 %v72
    %192 = vmatprep.subr.mxu0 0.0
    %193 = vmatpush1.msra.mxu0 %v73
    %194 = vmatprep.subr.mxu0 0.0
    %195 = vmatpush1.msra.mxu0 %v74
    %196 = vmatprep.subr.mxu0 0.0
    %197 = vmatpush1.msra.mxu0 %v75
    %198 = vmatprep.subr.mxu0 0.0
    %199 = vmatpush1.msra.mxu0 %v76
    %200 = vmatprep.subr.mxu0 0.0
    %201 = vmatpush1.msra.mxu0 %v77
    %202 = vmatprep.subr.mxu0 0.0
    %203 = vmatpush1.msra.mxu0 %v78
    %204 = vmatprep.subr.mxu0 0.0
    %205 = vmatpush1.msra.mxu0 %v79
    %206 = vmatprep.subr.mxu0 0.0
    %207 = vmatpush1.msra.mxu0 %v80
    %208 = vmatprep.subr.mxu0 0.0
    %209 = vmatpush1.msra.mxu0 %v81
    %210 = vmatprep.subr.mxu0 0.0
    %211 = vmatpush1.msra.mxu0 %v82
    %212 = vmatprep.subr.mxu0 0.0
    %213 = vmatpush1.msra.mxu0 %v83
    %214 = vmatprep.subr.mxu0 0.0
    %215 = vmatpush1.msra.mxu0 %v84
    %216 = vmatprep.subr.mxu0 0.0
    %217 = vmatpush1.msra.mxu0 %v85
    %218 = vmatprep.subr.mxu0 0.0
    %219 = vmatpush1.msra.mxu0 %v86
    %220 = vmatprep.subr.mxu0 0.0
    %221 = vmatpush1.msra.mxu0 %v87
    %222 = vmatprep.subr.mxu0 0.0
    %223 = vmatpush1.msra.mxu0 %v88
    %224 = vmatprep.subr.mxu0 0.0
    %225 = vmatpush1.msra.mxu0 %v89
    %226 = vmatprep.subr.mxu0 0.0
    %227 = vmatpush1.msra.mxu0 %v90
    %228 = vmatprep.subr.mxu0 0.0
    %229 = vmatpush1.msra.mxu0 %v91
    %230 = vmatprep.subr.mxu0 0.0
    %231 = vmatpush1.msra.mxu0 %v92
    %232 = vmatprep.subr.mxu0 0.0
    %233 = vmatpush1.msra.mxu0 %v93
    %234 = vmatprep.subr.mxu0 0.0
    %235 = vmatpush1.msra.mxu0 %v94
    %236 = vmatprep.mubr.f32.mxu0 %v30
    %237 = vmatmul.mubr.f32.gmra.mrb[0].mxu0 %v29
    %v238 = vpop.f32.mrb[0].mxu0
    %v239 = vadd.f32 %v169, %v238
    %v240 = vpop.f32.mrb[0].mxu0
    %241 = vdwg.mxu0
    %v242 = vmax.f32 %v239, 0.0
    %v243 = vld [vmem:[%s3] sm:$0xff]
    %v244 = vld [vmem:[%s3 + $0x8] sm:$0xff]
    %v245 = vld [vmem:[%s3 + $0x10] sm:$0xff]
    %v246 = vld [vmem:[%s3 + $0x18] sm:$0xff]
    %v247 = vld [vmem:[%s3 + $0x20] sm:$0xff]
    %v248 = vld [vmem:[%s3 + $0x28] sm:$0xff]
    %v249 = vld [vmem:[%s3 + $0x30] sm:$0xff]
    %v250 = vld [vmem:[%s3 + $0x38] sm:$0xff]
    %v251 = vld [vmem:[%s3 + $0x40] sm:$0xff]
    %v252 = vld [vmem:[%s3 + $0x48] sm:$0xff]
    %v253 = vld [vmem:[%s3 + $0x50] sm:$0xff]
    %v254 = vld [vmem:[%s3 + $0x58] sm:$0xff]
    %v255 = vld [vmem:[%s3 + $0x60] sm:$0xff]
    %v256 = vld [vmem:[%s3 + $0x68] sm:$0xff]
    %v257 = vld [vmem:[%s3 + $0x70] sm:$0xff]
    %v258 = vld [vmem:[%s3 + $0x78] sm:$0xff]
    %v259 = vld [vmem:[%s3 + $0x80] sm:$0xff]
    %v260 = vld [vmem:[%s3 + $0x88] sm:$0xff]
    %v261 = vld [vmem:[%s3 + $0x90] sm:$0xff]
    %v262 = vld [vmem:[%s3 + $0x98] sm:$0xff]
    %v263 = vld [vmem:[%s3 + $0xa0] sm:$0xff]
    %v264 = vld [vmem:[%s3 + $0xa8] sm:$0xff]
    %v265 = vld [vmem:[%s3 + $0xb0] sm:$0xff]
    %v266 = vld [vmem:[%s3 + $0xb8] sm:$0xff]
    %v267 = vld [vmem:[%s4] sm:$0x7]
    %v269 = vlaneseq
    %v270 = vshrl.u32 %v269, 7
    %v271 = vsub.s32 0, %v270
    %v272 = vrot.slane %v267, %v271
    %v273 = vlaneseq
    %v274 = vshrl.u32 %v273, 7
    %v275 = vsub.s32 1, %v274
    %v276 = vrot.slane %v267, %v275
    %v277 = vlaneseq
    %v278 = vshrl.u32 %v277, 7
    %v279 = vsub.s32 2, %v278
    %v280 = vrot.slane %v267, %v279
    %vm284 = vcmask 523264
    %v286 = vsel %vm284, %v242, 0
    %288 = vmatprep.subr.mxu0 %v244
    %289 = vmatpush1.msra.mxu0 %v243
    %290 = vmatprep.subr.mxu0 %v247
    %291 = vmatpush1.msra.mxu0 %v246
    %292 = vmatprep.subr.mxu0 %v250
    %293 = vmatpush1.msra.mxu0 %v249
    %294 = vmatprep.subr.mxu0 %v253
    %295 = vmatpush1.msra.mxu0 %v252
    %296 = vmatprep.subr.mxu0 %v256
    %297 = vmatpush1.msra.mxu0 %v255
    %298 = vmatprep.subr.mxu0 %v259
    %299 = vmatpush1.msra.mxu0 %v258
    %300 = vmatprep.subr.mxu0 %v262
    %301 = vmatpush1.msra.mxu0 %v261
    %302 = vmatprep.subr.mxu0 %v265
    %303 = vmatpush1.msra.mxu0 %v264
    %304 = vmatprep.subr.mxu0 0.0
    %305 = vmatpush1.msra.mxu0 0.0
    %306 = vmatprep.subr.mxu0 0.0
    %307 = vmatpush1.msra.mxu0 0.0
    %308 = vmatprep.subr.mxu0 0.0
    %309 = vmatpush1.msra.mxu0 0.0
    %310 = vmatprep.subr.mxu0 0.0
    %311 = vmatpush1.msra.mxu0 0.0
    %312 = vmatprep.subr.mxu0 0.0
    %313 = vmatpush1.msra.mxu0 0.0
    %314 = vmatprep.subr.mxu0 0.0
    %315 = vmatpush1.msra.mxu0 0.0
    %316 = vmatprep.subr.mxu0 0.0
    %317 = vmatpush1.msra.mxu0 0.0
    %318 = vmatprep.subr.mxu0 0.0
    %319 = vmatpush1.msra.mxu0 0.0
    %320 = vmatprep.subr.mxu0 0.0
    %321 = vmatpush1.msra.mxu0 0.0
    %322 = vmatprep.subr.mxu0 0.0
    %323 = vmatpush1.msra.mxu0 0.0
    %324 = vmatprep.subr.mxu0 0.0
    %325 = vmatpush1.msra.mxu0 0.0
    %326 = vmatprep.subr.mxu0 0.0
    %327 = vmatpush1.msra.mxu0 0.0
    %328 = vmatprep.subr.mxu0 0.0
    %329 = vmatpush1.msra.mxu0 0.0
    %330 = vmatprep.subr.mxu0 0.0
    %331 = vmatpush1.msra.mxu0 0.0
    %332 = vmatprep.subr.mxu0 0.0
    %333 = vmatpush1.msra.mxu0 0.0
    %334 = vmatprep.subr.mxu0 0.0
    %335 = vmatpush1.msra.mxu0 0.0
    %336 = vmatprep.subr.mxu0 0.0
    %337 = vmatpush1.msra.mxu0 0.0
    %338 = vmatprep.subr.mxu0 0.0
    %339 = vmatpush1.msra.mxu0 0.0
    %340 = vmatprep.subr.mxu0 0.0
    %341 = vmatpush1.msra.mxu0 0.0
    %342 = vmatprep.subr.mxu0 0.0
    %343 = vmatpush1.msra.mxu0 0.0
    %344 = vmatprep.subr.mxu0 0.0
    %345 = vmatpush1.msra.mxu0 0.0
    %346 = vmatprep.subr.mxu0 0.0
    %347 = vmatpush1.msra.mxu0 0.0
    %348 = vmatprep.subr.mxu0 0.0
    %349 = vmatpush1.msra.mxu0 0.0
    %350 = vmatprep.subr.mxu0 0.0
    %351 = vmatpush1.msra.mxu0 0.0
    %352 = vmatprep.mubr.f32.mxu0 0.0
    %353 = vmatmul.mubr.f32.gmra.mrb[0].mxu0 %v286
    %v354 = vpop.f32.mrb[0].mxu0
    %v355 = vadd.f32 %v272, %v354
    %v356 = vpop.f32.mrb[0].mxu0
    %v357 = vadd.f32 %v276, %v356
    %358 = vdwg.mxu0
    %359 = vmatprep.subr.mxu0 0.0
    %360 = vmatpush1.msra.mxu0 %v245
    %361 = vmatprep.subr.mxu0 0.0
    %362 = vmatpush1.msra.mxu0 %v248
    %363 = vmatprep.subr.mxu0 0.0
    %364 = vmatpush1.msra.mxu0 %v251
    %365 = vmatprep.subr.mxu0 0.0
    %366 = vmatpush1.msra.mxu0 %v254
    %367 = vmatprep.subr.mxu0 0.0
    %368 = vmatpush1.msra.mxu0 %v257
    %369 = vmatprep.subr.mxu0 0.0
    %370 = vmatpush1.msra.mxu0 %v260
    %371 = vmatprep.subr.mxu0 0.0
    %372 = vmatpush1.msra.mxu0 %v263
    %373 = vmatprep.subr.mxu0 0.0
    %374 = vmatpush1.msra.mxu0 %v266
    %375 = vmatprep.subr.mxu0 0.0
    %376 = vmatpush1.msra.mxu0 0.0
    %377 = vmatprep.subr.mxu0 0.0
    %378 = vmatpush1.msra.mxu0 0.0
    %379 = vmatprep.subr.mxu0 0.0
    %380 = vmatpush1.msra.mxu0 0.0
    %381 = vmatprep.subr.mxu0 0.0
    %382 = vmatpush1.msra.mxu0 0.0
    %383 = vmatprep.subr.mxu0 0.0
    %384 = vmatpush1.msra.mxu0 0.0
    %385 = vmatprep.subr.mxu0 0.0
    %386 = vmatpush1.msra.mxu0 0.0
    %387 = vmatprep.subr.mxu0 0.0
    %388 = vmatpush1.msra.mxu0 0.0
    %389 = vmatprep.subr.mxu0 0.0
    %390 = vmatpush1.msra.mxu0 0.0
    %391 = vmatprep.subr.mxu0 0.0
    %392 = vmatpush1.msra.mxu0 0.0
    %393 = vmatprep.subr.mxu0 0.0
    %394 = vmatpush1.msra.mxu0 0.0
    %395 = vmatprep.subr.mxu0 0.0
    %396 = vmatpush1.msra.mxu0 0.0
    %397 = vmatprep.subr.mxu0 0.0
    %398 = vmatpush1.msra.mxu0 0.0
    %399 = vmatprep.subr.mxu0 0.0
    %400 = vmatpush1.msra.mxu0 0.0
    %401 = vmatprep.subr.mxu0 0.0
    %402 = vmatpush1.msra.mxu0 0.0
    %403 = vmatprep.subr.mxu0 0.0
    %404 = vmatpush1.msra.mxu0 0.0
    %405 = vmatprep.subr.mxu0 0.0
    %406 = vmatpush1.msra.mxu0 0.0
    %407 = vmatprep.subr.mxu0 0.0
    %408 = vmatpush1.msra.mxu0 0.0
    %409 = vmatprep.subr.mxu0 0.0
    %410 = vmatpush1.msra.mxu0 0.0
    %411 = vmatprep.subr.mxu0 0.0
    %412 = vmatpush1.msra.mxu0 0.0
    %413 = vmatprep.subr.mxu0 0.0
    %414 = vmatpush1.msra.mxu0 0.0
    %415 = vmatprep.subr.mxu0 0.0
    %416 = vmatpush1.msra.mxu0 0.0
    %417 = vmatprep.subr.mxu0 0.0
    %418 = vmatpush1.msra.mxu0 0.0
    %419 = vmatprep.subr.mxu0 0.0
    %420 = vmatpush1.msra.mxu0 0.0
    %421 = vmatprep.subr.mxu0 0.0
    %422 = vmatpush1.msra.mxu0 0.0
    %423 = vmatprep.mubr.f32.mxu0 0.0
    %424 = vmatmul.mubr.f32.gmra.mrb[0].mxu0 %v286
    %v425 = vpop.f32.mrb[0].mxu0
    %v426 = vadd.f32 %v280, %v425
    %v427 = vpop.f32.mrb[0].mxu0
    %428 = vdwg.mxu0
    %vm429 = vcmask 80896
    %v430 = vsel %vm429, %v355, -inf
    %431 = vmax.xlane.f32.xlu0 %v430
    %v432 = vpop.xlane.xlu0 %431
    %vm433 = vcmask 162896
    %v434 = vsel %vm433, %v355, -inf
    %435 = vmax.xlane.f32.xlu0 %v434
    %v436 = vpop.xlane.xlu0 %435
    %vm437 = vcmask 244896
    %v438 = vsel %vm437, %v355, -inf
    %439 = vmax.xlane.f32.xlu0 %v438
    %v440 = vpop.xlane.xlu0 %439
    %vm441 = vcmask 326896
    %v442 = vsel %vm441, %v355, -inf
    %443 = vmax.xlane.f32.xlu0 %v442
    %v444 = vpop.xlane.xlu0 %443
    %vm445 = vcmask 408896
    %v446 = vsel %vm445, %v355, -inf
    %447 = vmax.xlane.f32.xlu0 %v446
    %v448 = vpop.xlane.xlu0 %447
    %vm449 = vcmask 490896
    %v450 = vsel %vm449, %v355, -inf
    %451 = vmax.xlane.f32.xlu0 %v450
    %v452 = vpop.xlane.xlu0 %451
    %vm453 = vcmask 572896
    %v454 = vsel %vm453, %v355, -inf
    %455 = vmax.xlane.f32.xlu0 %v454
    %v456 = vpop.xlane.xlu0 %455
    %vm457 = vcmask 654896
    %v458 = vsel %vm457, %v355, -inf
    %459 = vmax.xlane.f32.xlu0 %v458
    %v460 = vpop.xlane.xlu0 %459
    %vm461 = vcmask 736896
    %v462 = vsel %vm461, %v355, -inf
    %463 = vmax.xlane.f32.xlu0 %v462
    %v464 = vpop.xlane.xlu0 %463
    %vm465 = vcmask 818896
    %v466 = vsel %vm465, %v355, -inf
    %467 = vmax.xlane.f32.xlu0 %v466
    %v468 = vpop.xlane.xlu0 %467
    %vm469 = vcmask 900896
    %v470 = vsel %vm469, %v355, -inf
    %471 = vmax.xlane.f32.xlu0 %v470
    %v472 = vpop.xlane.xlu0 %471
    %vm473 = vcmask 982896
    %v474 = vsel %vm473, %v355, -inf
    %475 = vmax.xlane.f32.xlu0 %v474
    %v476 = vpop.xlane.xlu0 %475
    %vm477 = vcmask 1048512
    %v478 = vsel %vm477, %v355, -inf
    %vm479 = vcmask 15360
    %v480 = vsel %vm479, %v357, -inf
    %v481 = vmax.f32 %v478, %v480
    %482 = vmax.xlane.f32.xlu0 %v481
    %v483 = vpop.xlane.xlu0 %482
    %vm484 = vcmask 97296
    %v485 = vsel %vm484, %v357, -inf
    %486 = vmax.xlane.f32.xlu0 %v485
    %v487 = vpop.xlane.xlu0 %486
    %vm488 = vcmask 179296
    %v489 = vsel %vm488, %v357, -inf
    %490 = vmax.xlane.f32.xlu0 %v489
    %v491 = vpop.xlane.xlu0 %490
    %vm492 = vcmask 261296
    %v493 = vsel %vm492, %v357, -inf
    %494 = vmax.xlane.f32.xlu0 %v493
    %v495 = vpop.xlane.xlu0 %494
    %vm496 = vcmask 343296
    %v497 = vsel %vm496, %v357, -inf
    %498 = vmax.xlane.f32.xlu0 %v497
    %v499 = vpop.xlane.xlu0 %498
    %vm500 = vcmask 425296
    %v501 = vsel %vm500, %v357, -inf
    %502 = vmax.xlane.f32.xlu0 %v501
    %v503 = vpop.xlane.xlu0 %502
    %vm504 = vcmask 507296
    %v505 = vsel %vm504, %v357, -inf
    %506 = vmax.xlane.f32.xlu0 %v505
    %v507 = vpop.xlane.xlu0 %506
    %vm508 = vcmask 589296
    %v509 = vsel %vm508, %v357, -inf
    %510 = vmax.xlane.f32.xlu0 %v509
    %v511 = vpop.xlane.xlu0 %510
    %vm512 = vcmask 671296
    %v513 = vsel %vm512, %v357, -inf
    %514 = vmax.xlane.f32.xlu0 %v513
    %v515 = vpop.xlane.xlu0 %514
    %vm516 = vcmask 753296
    %v517 = vsel %vm516, %v357, -inf
    %518 = vmax.xlane.f32.xlu0 %v517
    %v519 = vpop.xlane.xlu0 %518
    %vm520 = vcmask 835296
    %v521 = vsel %vm520, %v357, -inf
    %522 = vmax.xlane.f32.xlu0 %v521
    %v523 = vpop.xlane.xlu0 %522
    %vm524 = vcmask 917296
    %v525 = vsel %vm524, %v357, -inf
    %526 = vmax.xlane.f32.xlu0 %v525
    %v527 = vpop.xlane.xlu0 %526
    %vm528 = vcmask 999296
    %v529 = vsel %vm528, %v357, -inf
    %530 = vmax.xlane.f32.xlu0 %v529
    %v531 = vpop.xlane.xlu0 %530
    %vm532 = vcmask 1048528
    %v533 = vsel %vm532, %v357, -inf
    %vm534 = vcmask 31744
    %v535 = vsel %vm534, %v426, -inf
    %v536 = vmax.f32 %v533, %v535
    %537 = vmax.xlane.f32.xlu0 %v536
    %v538 = vpop.xlane.xlu0 %537
    %vm539 = vcmask 113696
    %v540 = vsel %vm539, %v426, -inf
    %541 = vmax.xlane.f32.xlu0 %v540
    %v542 = vpop.xlane.xlu0 %541
    %vm543 = vcmask 195696
    %v544 = vsel %vm543, %v426, -inf
    %545 = vmax.xlane.f32.xlu0 %v544
    %v546 = vpop.xlane.xlu0 %545
    %vm547 = vcmask 277696
    %v548 = vsel %vm547, %v426, -inf
    %549 = vmax.xlane.f32.xlu0 %v548
    %v550 = vpop.xlane.xlu0 %549
    %vm551 = vcmask 359696
    %v552 = vsel %vm551, %v426, -inf
    %553 = vmax.xlane.f32.xlu0 %v552
    %v554 = vpop.xlane.xlu0 %553
    %vm555 = vcmask 7168
    %v556 = vsel %vm555, %v432, %v436
    %v557 = vsel %vm479, %v556, %v440
    %vm558 = vcmask 23552
    %v559 = vsel %vm558, %v557, %v444
    %v560 = vsel %vm534, %v559, %v448
    %vm561 = vcmask 39936
    %v562 = vsel %vm561, %v560, %v452
    %vm563 = vcmask 48128
    %v564 = vsel %vm563, %v562, %v456
    %vm565 = vcmask 56320
    %v566 = vsel %vm565, %v564, %v460
    %vm567 = vcmask 64512
    %v568 = vsel %vm567, %v566, %v464
    %vm569 = vcmask 72704
    %v570 = vsel %vm569, %v568, %v468
    %v571 = vsel %vm429, %v570, %v472
    %vm572 = vcmask 89088
    %v573 = vsel %vm572, %v571, %v476
    %vm574 = vcmask 97280
    %v575 = vsel %vm574, %v573, %v483
    %vm576 = vcmask 105472
    %v577 = vsel %vm576, %v575, %v487
    %vm578 = vcmask 113664
    %v579 = vsel %vm578, %v577, %v491
    %vm580 = vcmask 121856
    %v581 = vsel %vm580, %v579, %v495
    %v582 = vsel %vm555, %v499, %v503
    %v583 = vsel %vm479, %v582, %v507
    %v584 = vsel %vm558, %v583, %v511
    %v585 = vsel %vm534, %v584, %v515
    %v586 = vsel %vm561, %v585, %v519
    %v587 = vsel %vm563, %v586, %v523
    %v588 = vsel %vm565, %v587, %v527
    %v589 = vsel %vm567, %v588, %v531
    %v590 = vsel %vm569, %v589, %v538
    %v591 = vsel %vm429, %v590, %v542
    %v592 = vsel %vm572, %v591, %v546
    %v593 = vsel %vm574, %v592, %v550
    %v594 = vsel %vm576, %v593, %v554
    %596 = vrot.lane.b32.xlu0 %v594, 16
    %v597 = vpop.permute.xlu0 %596
    %vm599 = vcmask 130048
    %v600 = vsel %vm599, %v581, %v597
    %v601 = vld [vmem:[%s6] sm:$0xff]
    %v602 = vld [vmem:[%s6 + $0x8] sm:$0xff]
    %v603 = vld [vmem:[%s6 + $0x10] sm:$0xff]
    %v604 = vld [vmem:[%s6 + $0x18] sm:$0xff]
    %v605 = vld [vmem:[%s6 + $0x20] sm:$0xff]
    %v606 = vld [vmem:[%s6 + $0x28] sm:$0xff]
    %v607 = vld [vmem:[%s6 + $0x30] sm:$0xff]
    %v608 = vld [vmem:[%s6 + $0x38] sm:$0xff]
    %v609 = vld [vmem:[%s6 + $0x40] sm:$0xff]
    %v610 = vld [vmem:[%s6 + $0x48] sm:$0x3f]
    %v611 = vld [vmem:[%s6 + $0x50] sm:$0x3f]
    %v612 = vld [vmem:[%s6 + $0x58] sm:$0x3f]
    %vm613 = vcmask 244736
    %v615 = vsel %vm613, %v600, 0
    %vm617 = vcmask 1045504
    %v619 = vsel %vm617, %v610, 0
    %v622 = vsel %vm617, %v611, 0
    %v625 = vsel %vm617, %v612, 0
    %627 = vmatprep.subr.mxu0 %v602
    %628 = vmatpush1.msra.mxu0 %v601
    %629 = vmatprep.subr.mxu0 %v605
    %630 = vmatpush1.msra.mxu0 %v604
    %631 = vmatprep.subr.mxu0 %v608
    %632 = vmatpush1.msra.mxu0 %v607
    %633 = vmatprep.subr.mxu0 %v622
    %634 = vmatpush1.msra.mxu0 %v619
    %635 = vmatprep.subr.mxu0 0.0
    %636 = vmatpush1.msra.mxu0 0.0
    %637 = vmatprep.subr.mxu0 0.0
    %638 = vmatpush1.msra.mxu0 0.0
    %639 = vmatprep.subr.mxu0 0.0
    %640 = vmatpush1.msra.mxu0 0.0
    %641 = vmatprep.subr.mxu0 0.0
    %642 = vmatpush1.msra.mxu0 0.0
    %643 = vmatprep.subr.mxu0 0.0
    %644 = vmatpush1.msra.mxu0 0.0
    %645 = vmatprep.subr.mxu0 0.0
    %646 = vmatpush1.msra.mxu0 0.0
    %647 = vmatprep.subr.mxu0 0.0
    %648 = vmatpush1.msra.mxu0 0.0
    %649 = vmatprep.subr.mxu0 0.0
    %650 = vmatpush1.msra.mxu0 0.0
    %651 = vmatprep.subr.mxu0 0.0
    %652 = vmatpush1.msra.mxu0 0.0
    %653 = vmatprep.subr.mxu0 0.0
    %654 = vmatpush1.msra.mxu0 0.0
    %655 = vmatprep.subr.mxu0 0.0
    %656 = vmatpush1.msra.mxu0 0.0
    %657 = vmatprep.subr.mxu0 0.0
    %658 = vmatpush1.msra.mxu0 0.0
    %659 = vmatprep.subr.mxu0 0.0
    %660 = vmatpush1.msra.mxu0 0.0
    %661 = vmatprep.subr.mxu0 0.0
    %662 = vmatpush1.msra.mxu0 0.0
    %663 = vmatprep.subr.mxu0 0.0
    %664 = vmatpush1.msra.mxu0 0.0
    %665 = vmatprep.subr.mxu0 0.0
    %666 = vmatpush1.msra.mxu0 0.0
    %667 = vmatprep.subr.mxu0 0.0
    %668 = vmatpush1.msra.mxu0 0.0
    %669 = vmatprep.subr.mxu0 0.0
    %670 = vmatpush1.msra.mxu0 0.0
    %671 = vmatprep.subr.mxu0 0.0
    %672 = vmatpush1.msra.mxu0 0.0
    %673 = vmatprep.subr.mxu0 0.0
    %674 = vmatpush1.msra.mxu0 0.0
    %675 = vmatprep.subr.mxu0 0.0
    %676 = vmatpush1.msra.mxu0 0.0
    %677 = vmatprep.subr.mxu0 0.0
    %678 = vmatpush1.msra.mxu0 0.0
    %679 = vmatprep.subr.mxu0 0.0
    %680 = vmatpush1.msra.mxu0 0.0
    %681 = vmatprep.subr.mxu0 0.0
    %682 = vmatpush1.msra.mxu0 0.0
    %683 = vmatprep.subr.mxu0 0.0
    %684 = vmatpush1.msra.mxu0 0.0
    %685 = vmatprep.subr.mxu0 0.0
    %686 = vmatpush1.msra.mxu0 0.0
    %687 = vmatprep.subr.mxu0 0.0
    %688 = vmatpush1.msra.mxu0 0.0
    %689 = vmatprep.subr.mxu0 0.0
    %690 = vmatpush1.msra.mxu0 0.0
    %691 = vmatprep.mubr.f32.mxu0 0.0
    %692 = vmatmul.mubr.f32.gmra.mrb[0].mxu0 %v615
    %v693 = vpop.f32.mrb[0].mxu0
    %v694 = vadd.f32 0.0, %v693
    %v695 = vpop.f32.mrb[0].mxu0
    %v696 = vadd.f32 0.0, %v695
    %697 = vdwg.mxu0
    %698 = vmatprep.subr.mxu0 0.0
    %699 = vmatpush1.msra.mxu0 %v603
    %700 = vmatprep.subr.mxu0 0.0
    %701 = vmatpush1.msra.mxu0 %v606
    %702 = vmatprep.subr.mxu0 0.0
    %703 = vmatpush1.msra.mxu0 %v609
    %704 = vmatprep.subr.mxu0 0.0
    %705 = vmatpush1.msra.mxu0 %v625
    %706 = vmatprep.subr.mxu0 0.0
    %707 = vmatpush1.msra.mxu0 0.0
    %708 = vmatprep.subr.mxu0 0.0
    %709 = vmatpush1.msra.mxu0 0.0
    %710 = vmatprep.subr.mxu0 0.0
    %711 = vmatpush1.msra.mxu0 0.0
    %712 = vmatprep.subr.mxu0 0.0
    %713 = vmatpush1.msra.mxu0 0.0
    %714 = vmatprep.subr.mxu0 0.0
    %715 = vmatpush1.msra.mxu0 0.0
    %716 = vmatprep.subr.mxu0 0.0
    %717 = vmatpush1.msra.mxu0 0.0
    %718 = vmatprep.subr.mxu0 0.0
    %719 = vmatpush1.msra.mxu0 0.0
    %720 = vmatprep.subr.mxu0 0.0
    %721 = vmatpush1.msra.mxu0 0.0
    %722 = vmatprep.subr.mxu0 0.0
    %723 = vmatpush1.msra.mxu0 0.0
    %724 = vmatprep.subr.mxu0 0.0
    %725 = vmatpush1.msra.mxu0 0.0
    %726 = vmatprep.subr.mxu0 0.0
    %727 = vmatpush1.msra.mxu0 0.0
    %728 = vmatprep.subr.mxu0 0.0
    %729 = vmatpush1.msra.mxu0 0.0
    %730 = vmatprep.subr.mxu0 0.0
    %731 = vmatpush1.msra.mxu0 0.0
    %732 = vmatprep.subr.mxu0 0.0
    %733 = vmatpush1.msra.mxu0 0.0
    %734 = vmatprep.subr.mxu0 0.0
    %735 = vmatpush1.msra.mxu0 0.0
    %736 = vmatprep.subr.mxu0 0.0
    %737 = vmatpush1.msra.mxu0 0.0
    %738 = vmatprep.subr.mxu0 0.0
    %739 = vmatpush1.msra.mxu0 0.0
    %740 = vmatprep.subr.mxu0 0.0
    %741 = vmatpush1.msra.mxu0 0.0
    %742 = vmatprep.subr.mxu0 0.0
    %743 = vmatpush1.msra.mxu0 0.0
    %744 = vmatprep.subr.mxu0 0.0
    %745 = vmatpush1.msra.mxu0 0.0
    %746 = vmatprep.subr.mxu0 0.0
    %747 = vmatpush1.msra.mxu0 0.0
    %748 = vmatprep.subr.mxu0 0.0
    %749 = vmatpush1.msra.mxu0 0.0
    %750 = vmatprep.subr.mxu0 0.0
    %751 = vmatpush1.msra.mxu0 0.0
    %752 = vmatprep.subr.mxu0 0.0
    %753 = vmatpush1.msra.mxu0 0.0
    %754 = vmatprep.subr.mxu0 0.0
    %755 = vmatpush1.msra.mxu0 0.0
    %756 = vmatprep.subr.mxu0 0.0
    %757 = vmatpush1.msra.mxu0 0.0
    %758 = vmatprep.subr.mxu0 0.0
    %759 = vmatpush1.msra.mxu0 0.0
    %760 = vmatprep.subr.mxu0 0.0
    %761 = vmatpush1.msra.mxu0 0.0
    %762 = vmatprep.mubr.f32.mxu0 0.0
    %763 = vmatmul.mubr.f32.gmra.mrb[0].mxu0 %v615
    %v764 = vpop.f32.mrb[0].mxu0
    %v765 = vadd.f32 0.0, %v764
    %v766 = vpop.f32.mrb[0].mxu0
    %767 = vdwg.mxu0
    %v768 = vsub.f32 %v355, %v694
    %v769 = vsub.f32 %v357, %v696
    %v770 = vsub.f32 %v426, %v765
    %v771 = vmul.f32 %v768, 1.442695
    %v772 = vpow.pop %v771
    %v773 = vmul.f32 %v769, 1.442695
    %v774 = vpow.pop %v773
    %v775 = vmul.f32 %v770, 1.442695
    %v776 = vpow.pop %v775
    %v777 = vld [vmem:[%s5] sm:$0xff]
    %v778 = vld [vmem:[%s5 + $0x8] sm:$0xff]
    %v779 = vld [vmem:[%s5 + $0x10] sm:$0xff]
    %v780 = vld [vmem:[%s5 + $0x18] sm:$0xff]
    %v781 = vld [vmem:[%s5 + $0x20] sm:$0xff]
    %v782 = vld [vmem:[%s5 + $0x28] sm:$0xff]
    %v783 = vld [vmem:[%s5 + $0x30] sm:$0xff]
    %v784 = vld [vmem:[%s5 + $0x38] sm:$0xff]
    %v785 = vld [vmem:[%s5 + $0x40] sm:$0xff]
    %v786 = vld [vmem:[%s5 + $0x48] sm:$0xff]
    %v787 = vld [vmem:[%s5 + $0x50] sm:$0xff]
    %v788 = vld [vmem:[%s5 + $0x58] sm:$0xff]
    %v789 = vld [vmem:[%s5 + $0x60] sm:$0xff]
    %v790 = vld [vmem:[%s5 + $0x68] sm:$0xff]
    %v791 = vld [vmem:[%s5 + $0x70] sm:$0xff]
    %v792 = vld [vmem:[%s5 + $0x78] sm:$0xff]
    %v793 = vld [vmem:[%s5 + $0x80] sm:$0xff]
    %v794 = vld [vmem:[%s5 + $0x88] sm:$0xff]
    %v795 = vld [vmem:[%s5 + $0x90] sm:$0xff]
    %v796 = vld [vmem:[%s5 + $0x98] sm:$0xff]
    %v797 = vld [vmem:[%s5 + $0xa0] sm:$0xff]
    %v798 = vld [vmem:[%s5 + $0xa8] sm:$0xff]
    %v799 = vld [vmem:[%s5 + $0xb0] sm:$0xff]
    %v800 = vld [vmem:[%s5 + $0xb8] sm:$0xff]
    %v801 = vld [vmem:[%s5 + $0xc0] sm:$0xff]
    %v802 = vld [vmem:[%s5 + $0xc8] sm:$0xff]
    %v803 = vld [vmem:[%s5 + $0xd0] sm:$0xff]
    %v804 = vld [vmem:[%s5 + $0xd8] sm:$0xff]
    %v805 = vld [vmem:[%s5 + $0xe0] sm:$0xff]
    %v806 = vld [vmem:[%s5 + $0xe8] sm:$0xff]
    %v807 = vld [vmem:[%s5 + $0xf0] sm:$0xff]
    %v808 = vld [vmem:[%s5 + $0xf8] sm:$0xff]
    %v809 = vld [vmem:[%s5 + $0x100] sm:$0xff]
    %v810 = vld [vmem:[%s5 + $0x108] sm:$0xff]
    %v811 = vld [vmem:[%s5 + $0x110] sm:$0xff]
    %v812 = vld [vmem:[%s5 + $0x118] sm:$0xff]
    %v813 = vld [vmem:[%s5 + $0x120] sm:$0xff]
    %v814 = vld [vmem:[%s5 + $0x128] sm:$0xff]
    %v815 = vld [vmem:[%s5 + $0x130] sm:$0xff]
    %v816 = vld [vmem:[%s5 + $0x138] sm:$0xff]
    %v817 = vld [vmem:[%s5 + $0x140] sm:$0xff]
    %v818 = vld [vmem:[%s5 + $0x148] sm:$0xff]
    %v819 = vld [vmem:[%s5 + $0x150] sm:$0xff]
    %v820 = vld [vmem:[%s5 + $0x158] sm:$0xff]
    %v821 = vld [vmem:[%s5 + $0x160] sm:$0xff]
    %v822 = vld [vmem:[%s5 + $0x168] sm:$0xff]
    %v823 = vld [vmem:[%s5 + $0x170] sm:$0xff]
    %v824 = vld [vmem:[%s5 + $0x178] sm:$0xff]
    %825 = vmatprep.subr.mxu0 0.0
    %826 = vmatpush1.msra.mxu0 %v777
    %827 = vmatprep.subr.mxu0 0.0
    %828 = vmatpush1.msra.mxu0 %v778
    %829 = vmatprep.subr.mxu0 0.0
    %830 = vmatpush1.msra.mxu0 %v779
    %831 = vmatprep.subr.mxu0 0.0
    %832 = vmatpush1.msra.mxu0 %v780
    %833 = vmatprep.subr.mxu0 0.0
    %834 = vmatpush1.msra.mxu0 %v781
    %835 = vmatprep.subr.mxu0 0.0
    %836 = vmatpush1.msra.mxu0 %v782
    %837 = vmatprep.subr.mxu0 0.0
    %838 = vmatpush1.msra.mxu0 %v783
    %839 = vmatprep.subr.mxu0 0.0
    %840 = vmatpush1.msra.mxu0 %v784
    %841 = vmatprep.subr.mxu0 0.0
    %842 = vmatpush1.msra.mxu0 %v785
    %843 = vmatprep.subr.mxu0 0.0
    %844 = vmatpush1.msra.mxu0 %v786
    %845 = vmatprep.subr.mxu0 0.0
    %846 = vmatpush1.msra.mxu0 %v787
    %847 = vmatprep.subr.mxu0 0.0
    %848 = vmatpush1.msra.mxu0 %v788
    %849 = vmatprep.subr.mxu0 0.0
    %850 = vmatpush1.msra.mxu0 %v789
    %851 = vmatprep.subr.mxu0 0.0
    %852 = vmatpush1.msra.mxu0 %v790
    %853 = vmatprep.subr.mxu0 0.0
    %854 = vmatpush1.msra.mxu0 %v791
    %855 = vmatprep.subr.mxu0 0.0
    %856 = vmatpush1.msra.mxu0 %v792
    %857 = vmatprep.subr.mxu0 0.0
    %858 = vmatpush1.msra.mxu0 %v793
    %859 = vmatprep.subr.mxu0 0.0
    %860 = vmatpush1.msra.mxu0 %v794
    %861 = vmatprep.subr.mxu0 0.0
    %862 = vmatpush1.msra.mxu0 %v795
    %863 = vmatprep.subr.mxu0 0.0
    %864 = vmatpush1.msra.mxu0 %v796
    %865 = vmatprep.subr.mxu0 0.0
    %866 = vmatpush1.msra.mxu0 %v797
    %867 = vmatprep.subr.mxu0 0.0
    %868 = vmatpush1.msra.mxu0 %v798
    %869 = vmatprep.subr.mxu0 0.0
    %870 = vmatpush1.msra.mxu0 %v799
    %871 = vmatprep.subr.mxu0 0.0
    %872 = vmatpush1.msra.mxu0 %v800
    %873 = vmatprep.subr.mxu0 0.0
    %874 = vmatpush1.msra.mxu0 %v801
    %875 = vmatprep.subr.mxu0 0.0
    %876 = vmatpush1.msra.mxu0 %v802
    %877 = vmatprep.subr.mxu0 0.0
    %878 = vmatpush1.msra.mxu0 %v803
    %879 = vmatprep.subr.mxu0 0.0
    %880 = vmatpush1.msra.mxu0 %v804
    %881 = vmatprep.subr.mxu0 0.0
    %882 = vmatpush1.msra.mxu0 %v805
    %883 = vmatprep.subr.mxu0 0.0
    %884 = vmatpush1.msra.mxu0 %v806
    %885 = vmatprep.subr.mxu0 0.0
    %886 = vmatpush1.msra.mxu0 %v807
    %887 = vmatprep.subr.mxu0 0.0
    %888 = vmatpush1.msra.mxu0 %v808
    %889 = vmatprep.mubr.f32.mxu0 %v774
    %890 = vmatmul.mubr.f32.gmra.mrb[0].mxu0 %v772
    %v891 = vpop.f32.mrb[0].mxu0
    %v892 = vadd.f32 0.0, %v891
    %v893 = vpop.f32.mrb[0].mxu0
    %894 = vdwg.mxu0
    %895 = vmatprep.subr.mxu0 0.0
    %896 = vmatpush1.msra.mxu0 %v809
    %897 = vmatprep.subr.mxu0 0.0
    %898 = vmatpush1.msra.mxu0 %v810
    %899 = vmatprep.subr.mxu0 0.0
    %900 = vmatpush1.msra.mxu0 %v811
    %901 = vmatprep.subr.mxu0 0.0
    %902 = vmatpush1.msra.mxu0 %v812
    %903 = vmatprep.subr.mxu0 0.0
    %904 = vmatpush1.msra.mxu0 %v813
    %905 = vmatprep.subr.mxu0 0.0
    %906 = vmatpush1.msra.mxu0 %v814
    %907 = vmatprep.subr.mxu0 0.0
    %908 = vmatpush1.msra.mxu0 %v815
    %909 = vmatprep.subr.mxu0 0.0
    %910 = vmatpush1.msra.mxu0 %v816
    %911 = vmatprep.subr.mxu0 0.0
    %912 = vmatpush1.msra.mxu0 %v817
    %913 = vmatprep.subr.mxu0 0.0
    %914 = vmatpush1.msra.mxu0 %v818
    %915 = vmatprep.subr.mxu0 0.0
    %916 = vmatpush1.msra.mxu0 %v819
    %917 = vmatprep.subr.mxu0 0.0
    %918 = vmatpush1.msra.mxu0 %v820
    %919 = vmatprep.subr.mxu0 0.0
    %920 = vmatpush1.msra.mxu0 %v821
    %921 = vmatprep.subr.mxu0 0.0
    %922 = vmatpush1.msra.mxu0 %v822
    %923 = vmatprep.subr.mxu0 0.0
    %924 = vmatpush1.msra.mxu0 %v823
    %925 = vmatprep.subr.mxu0 0.0
    %926 = vmatpush1.msra.mxu0 %v824
    %927 = vmatprep.subr.mxu0 0.0
    %928 = vmatpush1.msra.mxu0 0.0
    %929 = vmatprep.subr.mxu0 0.0
    %930 = vmatpush1.msra.mxu0 0.0
    %931 = vmatprep.subr.mxu0 0.0
    %932 = vmatpush1.msra.mxu0 0.0
    %933 = vmatprep.subr.mxu0 0.0
    %934 = vmatpush1.msra.mxu0 0.0
    %935 = vmatprep.subr.mxu0 0.0
    %936 = vmatpush1.msra.mxu0 0.0
    %937 = vmatprep.subr.mxu0 0.0
    %938 = vmatpush1.msra.mxu0 0.0
    %939 = vmatprep.subr.mxu0 0.0
    %940 = vmatpush1.msra.mxu0 0.0
    %941 = vmatprep.subr.mxu0 0.0
    %942 = vmatpush1.msra.mxu0 0.0
    %943 = vmatprep.subr.mxu0 0.0
    %944 = vmatpush1.msra.mxu0 0.0
    %945 = vmatprep.subr.mxu0 0.0
    %946 = vmatpush1.msra.mxu0 0.0
    %947 = vmatprep.subr.mxu0 0.0
    %948 = vmatpush1.msra.mxu0 0.0
    %949 = vmatprep.subr.mxu0 0.0
    %950 = vmatpush1.msra.mxu0 0.0
    %951 = vmatprep.subr.mxu0 0.0
    %952 = vmatpush1.msra.mxu0 0.0
    %953 = vmatprep.subr.mxu0 0.0
    %954 = vmatpush1.msra.mxu0 0.0
    %955 = vmatprep.subr.mxu0 0.0
    %956 = vmatpush1.msra.mxu0 0.0
    %957 = vmatprep.subr.mxu0 0.0
    %958 = vmatpush1.msra.mxu0 0.0
    %959 = vmatprep.mubr.f32.mxu0 0.0
    %960 = vmatmul.mubr.f32.gmra.mrb[0].mxu0 %v776
    %v961 = vpop.f32.mrb[0].mxu0
    %v962 = vadd.f32 %v892, %v961
    %v963 = vpop.f32.mrb[0].mxu0
    %964 = vdwg.mxu0
    %v966 = vsel %vm613, %v962, 0
    %968 = vmatprep.subr.mxu0 %v602
    %969 = vmatpush1.msra.mxu0 %v601
    %970 = vmatprep.subr.mxu0 %v605
    %971 = vmatpush1.msra.mxu0 %v604
    %972 = vmatprep.subr.mxu0 %v608
    %973 = vmatpush1.msra.mxu0 %v607
    %974 = vmatprep.subr.mxu0 %v622
    %975 = vmatpush1.msra.mxu0 %v619
    %976 = vmatprep.subr.mxu0 0.0
    %977 = vmatpush1.msra.mxu0 0.0
    %978 = vmatprep.subr.mxu0 0.0
    %979 = vmatpush1.msra.mxu0 0.0
    %980 = vmatprep.subr.mxu0 0.0
    %981 = vmatpush1.msra.mxu0 0.0
    %982 = vmatprep.subr.mxu0 0.0
    %983 = vmatpush1.msra.mxu0 0.0
    %984 = vmatprep.subr.mxu0 0.0
    %985 = vmatpush1.msra.mxu0 0.0
    %986 = vmatprep.subr.mxu0 0.0
    %987 = vmatpush1.msra.mxu0 0.0
    %988 = vmatprep.subr.mxu0 0.0
    %989 = vmatpush1.msra.mxu0 0.0
    %990 = vmatprep.subr.mxu0 0.0
    %991 = vmatpush1.msra.mxu0 0.0
    %992 = vmatprep.subr.mxu0 0.0
    %993 = vmatpush1.msra.mxu0 0.0
    %994 = vmatprep.subr.mxu0 0.0
    %995 = vmatpush1.msra.mxu0 0.0
    %996 = vmatprep.subr.mxu0 0.0
    %997 = vmatpush1.msra.mxu0 0.0
    %998 = vmatprep.subr.mxu0 0.0
    %999 = vmatpush1.msra.mxu0 0.0
    %1000 = vmatprep.subr.mxu0 0.0
    %1001 = vmatpush1.msra.mxu0 0.0
    %1002 = vmatprep.subr.mxu0 0.0
    %1003 = vmatpush1.msra.mxu0 0.0
    %1004 = vmatprep.subr.mxu0 0.0
    %1005 = vmatpush1.msra.mxu0 0.0
    %1006 = vmatprep.subr.mxu0 0.0
    %1007 = vmatpush1.msra.mxu0 0.0
    %1008 = vmatprep.subr.mxu0 0.0
    %1009 = vmatpush1.msra.mxu0 0.0
    %1010 = vmatprep.subr.mxu0 0.0
    %1011 = vmatpush1.msra.mxu0 0.0
    %1012 = vmatprep.subr.mxu0 0.0
    %1013 = vmatpush1.msra.mxu0 0.0
    %1014 = vmatprep.subr.mxu0 0.0
    %1015 = vmatpush1.msra.mxu0 0.0
    %1016 = vmatprep.subr.mxu0 0.0
    %1017 = vmatpush1.msra.mxu0 0.0
    %1018 = vmatprep.subr.mxu0 0.0
    %1019 = vmatpush1.msra.mxu0 0.0
    %1020 = vmatprep.subr.mxu0 0.0
    %1021 = vmatpush1.msra.mxu0 0.0
    %1022 = vmatprep.subr.mxu0 0.0
    %1023 = vmatpush1.msra.mxu0 0.0
    %1024 = vmatprep.subr.mxu0 0.0
    %1025 = vmatpush1.msra.mxu0 0.0
    %1026 = vmatprep.subr.mxu0 0.0
    %1027 = vmatpush1.msra.mxu0 0.0
    %1028 = vmatprep.subr.mxu0 0.0
    %1029 = vmatpush1.msra.mxu0 0.0
    %1030 = vmatprep.subr.mxu0 0.0
    %1031 = vmatpush1.msra.mxu0 0.0
    %1032 = vmatprep.mubr.f32.mxu0 0.0
    %1033 = vmatmul.mubr.f32.gmra.mrb[0].mxu0 %v966
    %v1034 = vpop.f32.mrb[0].mxu0
    %v1035 = vadd.f32 0.0, %v1034
    %v1036 = vpop.f32.mrb[0].mxu0
    %v1037 = vadd.f32 0.0, %v1036
    %1038 = vdwg.mxu0
    %1039 = vmatprep.subr.mxu0 0.0
    %1040 = vmatpush1.msra.mxu0 %v603
    %1041 = vmatprep.subr.mxu0 0.0
    %1042 = vmatpush1.msra.mxu0 %v606
    %1043 = vmatprep.subr.mxu0 0.0
    %1044 = vmatpush1.msra.mxu0 %v609
    %1045 = vmatprep.subr.mxu0 0.0
    %1046 = vmatpush1.msra.mxu0 %v625
    %1047 = vmatprep.subr.mxu0 0.0
    %1048 = vmatpush1.msra.mxu0 0.0
    %1049 = vmatprep.subr.mxu0 0.0
    %1050 = vmatpush1.msra.mxu0 0.0
    %1051 = vmatprep.subr.mxu0 0.0
    %1052 = vmatpush1.msra.mxu0 0.0
    %1053 = vmatprep.subr.mxu0 0.0
    %1054 = vmatpush1.msra.mxu0 0.0
    %1055 = vmatprep.subr.mxu0 0.0
    %1056 = vmatpush1.msra.mxu0 0.0
    %1057 = vmatprep.subr.mxu0 0.0
    %1058 = vmatpush1.msra.mxu0 0.0
    %1059 = vmatprep.subr.mxu0 0.0
    %1060 = vmatpush1.msra.mxu0 0.0
    %1061 = vmatprep.subr.mxu0 0.0
    %1062 = vmatpush1.msra.mxu0 0.0
    %1063 = vmatprep.subr.mxu0 0.0
    %1064 = vmatpush1.msra.mxu0 0.0
    %1065 = vmatprep.subr.mxu0 0.0
    %1066 = vmatpush1.msra.mxu0 0.0
    %1067 = vmatprep.subr.mxu0 0.0
    %1068 = vmatpush1.msra.mxu0 0.0
    %1069 = vmatprep.subr.mxu0 0.0
    %1070 = vmatpush1.msra.mxu0 0.0
    %1071 = vmatprep.subr.mxu0 0.0
    %1072 = vmatpush1.msra.mxu0 0.0
    %1073 = vmatprep.subr.mxu0 0.0
    %1074 = vmatpush1.msra.mxu0 0.0
    %1075 = vmatprep.subr.mxu0 0.0
    %1076 = vmatpush1.msra.mxu0 0.0
    %1077 = vmatprep.subr.mxu0 0.0
    %1078 = vmatpush1.msra.mxu0 0.0
    %1079 = vmatprep.subr.mxu0 0.0
    %1080 = vmatpush1.msra.mxu0 0.0
    %1081 = vmatprep.subr.mxu0 0.0
    %1082 = vmatpush1.msra.mxu0 0.0
    %1083 = vmatprep.subr.mxu0 0.0
    %1084 = vmatpush1.msra.mxu0 0.0
    %1085 = vmatprep.subr.mxu0 0.0
    %1086 = vmatpush1.msra.mxu0 0.0
    %1087 = vmatprep.subr.mxu0 0.0
    %1088 = vmatpush1.msra.mxu0 0.0
    %1089 = vmatprep.subr.mxu0 0.0
    %1090 = vmatpush1.msra.mxu0 0.0
    %1091 = vmatprep.subr.mxu0 0.0
    %1092 = vmatpush1.msra.mxu0 0.0
    %1093 = vmatprep.subr.mxu0 0.0
    %1094 = vmatpush1.msra.mxu0 0.0
    %1095 = vmatprep.subr.mxu0 0.0
    %1096 = vmatpush1.msra.mxu0 0.0
    %1097 = vmatprep.subr.mxu0 0.0
    %1098 = vmatpush1.msra.mxu0 0.0
    %1099 = vmatprep.subr.mxu0 0.0
    %1100 = vmatpush1.msra.mxu0 0.0
    %1101 = vmatprep.subr.mxu0 0.0
    %1102 = vmatpush1.msra.mxu0 0.0
    %1103 = vmatprep.mubr.f32.mxu0 0.0
    %1104 = vmatmul.mubr.f32.gmra.mrb[0].mxu0 %v966
    %v1105 = vpop.f32.mrb[0].mxu0
    %v1106 = vadd.f32 0.0, %v1105
    %v1107 = vpop.f32.mrb[0].mxu0
    %1108 = vdwg.mxu0
    %v1109 = vrcp.pop %v1035
    %v1110 = vrcp.pop %v1037
    %v1111 = vrcp.pop %v1106
    %v1112 = vmul.f32 %v772, %v1109
    %v1113 = vmul.f32 %v774, %v1110
    %v1114 = vmul.f32 %v776, %v1111
    %1115 = vst [vmem:[#allocation2] sm:$0xff] %v1112
    %1116 = vst [vmem:[#allocation2 + $0x8] sm:$0xff] %v1113
    %1117 = vst [vmem:[#allocation2 + $0x10] sm:$0xff] %v1114
    // Predicated region
    $region30: #{tpu_custom_call.1} parent=1 // pred_check
      _
    $region31: #{tpu_custom_call.1} parent=1 // pred_check_branch
      %1119 = sbr.rel (0) target = $region33
    $region32: #{tpu_custom_call.1} parent=1 // pred_region
      %s1121 = ssub.s32 384, 384
      %1122 = vsyncadd [#allocation3], %s1121
      %s1124 = sshll.u32 [#allocation2], 4
      %s1125 = int_to_ptr.vmem [resolvable:$true] %s1124
      %1127 = dma.vmem_to_hbm [thread:$0]  %s1125, 384, %s7, [#allocation3]
    $region33: #{tpu_custom_call.1} parent=1 // pred_fallthru
      _
    // Predicated region
    $region34: #{tpu_custom_call.1} parent=1 // pred_check
      _
    $region35: #{tpu_custom_call.1} parent=1 // pred_check_branch
      %1129 = sbr.rel (0) target = $region37
    $region36: #{tpu_custom_call.1} parent=1 // pred_region
      %1130 = dma.done [#allocation3], 384
    $region37: #{tpu_custom_call.1} parent=1 // pred_fallthru
      _
    %1131 = vsyncpa [#allocation3], 1

</llo_original>
